<compile_context>
chip_gen: v5e
topology: v5e:2x2
jax: 0.10.0
libtpu: 0.0.40
codegen_flags: <defaults>
</compile_context>

<pallas_src>
import jax
import jax.numpy as jnp
from jax.experimental import pallas as pl
from jax.experimental.pallas import tpu as pltpu

SELU_ALPHA = 1.6732632423543772
SELU_SCALE = 1.0507009873554805


def _selu(x):
    return SELU_SCALE * jnp.where(x > 0, x, SELU_ALPHA * (jnp.exp(x) - 1.0))


def mlp_kernel(x_ref, w1_ref, b1_ref, w2_ref, b2_ref, w34_ref, b34_ref, o_ref):
    # h0 = SELU(flatten(x)); h1 = SELU(h0 W1 + b1); h2 = SELU(h1 W2 + b2)
    # out = h2 (W3 W4) + (b3 W4 + b4)        (W3/W4 fused offline)
    h0 = _selu(x_ref[...].astype(jnp.float32))          # f32 SELU (v5e-safe)
    h1 = jnp.dot(h0.astype(jnp.bfloat16), w1_ref[...],
                 preferred_element_type=jnp.float32) + b1_ref[...]
    h1 = _selu(h1)
    h2 = jnp.dot(h1.astype(jnp.bfloat16), w2_ref[...],
                 preferred_element_type=jnp.float32) + b2_ref[...]
    h2 = _selu(h2)
    # Fused W3·W4: output width is 1 -> VPU multiply + cross-lane reduce
    # instead of an MXU matmul that would use <1% of the systolic array.
    y = jnp.sum(h2 * w34_ref[...], axis=-1, keepdims=True) + b34_ref[...]
    # (TB, 1) output block: masked store, but output volume is tiny
    # (lane-dense slab deemed low priority by the perf review).
    o_ref[...] = y.astype(o_ref.dtype)


def _round_up(n, m):
    return ((n + m - 1) // m) * m


def nn_layer_forward(x, params, *, tb=512):
    """x: (B, T, 28) f32.  Returns (B, 1) f32 (eval-mode forward)."""
    B = x.shape[0]
    x_flat = x.reshape(B, -1).astype(jnp.float32)       # torch.flatten(x, 1)
    # .squeeze() in the reference only removes size-1 dims; no-op for B > 1.
    (w1, b1, w2, b2, w3, b3, w4, b4) = params
    d_in = x_flat.shape[1]

    # ---- offline packing / algebra (plain JAX, negligible cost) ----
    d_pad = _round_up(d_in, 128)                        # lane-dense K for W1
    tb = max(256, min(tb, _round_up(B, 256)))           # >=256 rows fills MXU
    b_pad = _round_up(B, tb)
    n_tiles = b_pad // tb

    w1p = jnp.zeros((d_pad, w1.shape[1]), jnp.bfloat16).at[:d_in].set(
        w1.astype(jnp.bfloat16))
    w2p = w2.astype(jnp.bfloat16)
    b1p = b1.astype(jnp.float32)
    b2p = b2.astype(jnp.float32)
    # Algebraic fusion of layers 3+4 (no SELU in between):
    #   h @ W3 @ W4 + b3 @ W4 + b4  ==  h @ W34 + b34
    w34 = (w3 @ w4).reshape(1, -1).astype(jnp.float32)  # (1, 256)
    b34 = (b3 @ w4 + b4).astype(jnp.float32)            # (1, 1)

    xp = jnp.pad(x_flat, ((0, b_pad - B), (0, d_pad - d_in))).astype(jnp.bfloat16)

    d_h1, d_h2 = w1.shape[1], w2.shape[1]               # 128, 256
    cost = pl.CostEstimate(
        flops=2 * b_pad * (d_pad * d_h1 + d_h1 * d_h2 + d_h2 * 1),
        transcendentals=b_pad * (d_pad + d_h1 + d_h2),
        bytes_accessed=(b_pad * d_pad * 2 + b_pad * 4
                        + (d_pad * d_h1 + d_h1 * d_h2) * 2
                        + (d_h1 + 2 * d_h2 + 1) * 4),
    )

    full = lambda shape: pl.BlockSpec(shape, lambda i: (0,) * len(shape))

    out = pl.pallas_call(
        mlp_kernel,
        out_shape=jax.ShapeDtypeStruct((b_pad, 1), jnp.float32),
        grid=(n_tiles,),
        in_specs=[
            pl.BlockSpec((tb, d_pad), lambda i: (i, 0)),   # x tile (pipelined)
            full(w1p.shape), full(b1p.shape),              # weights VMEM-resident
            full(w2p.shape), full(b2p.shape),
            full(w34.shape), full(b34.shape),
        ],
        out_specs=pl.BlockSpec((tb, 1), lambda i: (i, 0)),
        compiler_params=pltpu.CompilerParams(
            dimension_semantics=("parallel",)),            # megacore on v7x
        cost_estimate=cost,
    )(xp, w1p, b1p, w2p, b2p, w34, b34)
    return out[:B]


def init_params(key, time_step):
    """Deterministic param init matching the module's layer shapes.
    Weights stored transposed: (in_features, out_features); biases as (1, out)."""
    d_in = time_step * 28
    dims = [(d_in, 128), (128, 256), (256, 64), (64, 1)]
    params = []
    for fan_in, fan_out in dims:
        key, kw, kb = jax.random.split(key, 3)
        # xavier_uniform with gain=1.414 (as in the reference __init__)
        gain = 1.414
        limit = gain * jnp.sqrt(6.0 / (fan_in + fan_out))
        w = jax.random.uniform(kw, (fan_in, fan_out), jnp.float32, -limit, limit)
        # nn.Linear default bias init: U(-1/sqrt(fan_in), 1/sqrt(fan_in))
        blim = 1.0 / jnp.sqrt(float(fan_in))
        b = jax.random.uniform(kb, (1, fan_out), jnp.float32, -blim, blim)
        params.extend([w, b])
    return tuple(params)


def reference_forward(x, params):
    """Pure-JAX f32 reference of the PyTorch forward (eval mode, unfused)."""
    (w1, b1, w2, b2, w3, b3, w4, b4) = params
    h = x.reshape(x.shape[0], -1)
    h = _selu(h) @ w1 + b1
    h = _selu(h) @ w2 + b2
    h = _selu(h) @ w3 + b3
    h = h @ w4 + b4
    return h


if __name__ == "__main__":
    key = jax.random.PRNGKey(0)
    k_x, k_p = jax.random.split(key)

    batch, time_step = 2, 8                     # input features = 8*28 = 224
    x = jax.random.normal(k_x, (batch, time_step, 28), jnp.float32)
    params = init_params(k_p, time_step)

    out = jax.jit(nn_layer_forward)(x, params)
    out = jax.block_until_ready(out)

    ref = reference_forward(x, params)
    assert out.shape == (batch, 1)
    # bf16 MXU inputs => looser tolerance than the pure-f32 comparison.
    assert jnp.allclose(out, ref, atol=0.15, rtol=0.05), (
        f"max abs err {jnp.max(jnp.abs(out - ref))}")
    print("KERNEL_OK")
</pallas_src>

<mosaic_0001>
module attributes {stable_mosaic.version = 11 : i64} {
  func.func @mlp_kernel(%arg0: i32, %arg1: memref<256x256xbf16, #tpu.memory_space<vmem>>, %arg2: memref<256x128xbf16, #tpu.memory_space<vmem>>, %arg3: memref<1x128xf32, #tpu.memory_space<vmem>>, %arg4: memref<128x256xbf16, #tpu.memory_space<vmem>>, %arg5: memref<1x256xf32, #tpu.memory_space<vmem>>, %arg6: memref<1x256xf32, #tpu.memory_space<vmem>>, %arg7: memref<1x1xf32, #tpu.memory_space<vmem>>, %arg8: memref<256x1xf32, #tpu.memory_space<vmem>>) attributes {dimension_semantics = [#tpu.dimension_semantics<parallel>], iteration_bounds = array<i64: 1>, scalar_prefetch = 0 : i64, scratch_operands = 0 : i64, tpu.core_type = #tpu.core_type<tc>, window_params = [{transform_indices = @transform_0, window_bounds = array<i64: 256, 256>}, {pipeline_mode = #tpu.pipeline_mode<synchronous>, transform_indices = @transform_1, window_bounds = array<i64: 256, 128>}, {pipeline_mode = #tpu.pipeline_mode<synchronous>, transform_indices = @transform_2, window_bounds = array<i64: 1, 128>}, {pipeline_mode = #tpu.pipeline_mode<synchronous>, transform_indices = @transform_3, window_bounds = array<i64: 128, 256>}, {pipeline_mode = #tpu.pipeline_mode<synchronous>, transform_indices = @transform_4, window_bounds = array<i64: 1, 256>}, {pipeline_mode = #tpu.pipeline_mode<synchronous>, transform_indices = @transform_5, window_bounds = array<i64: 1, 256>}, {pipeline_mode = #tpu.pipeline_mode<synchronous>, transform_indices = @transform_6, window_bounds = array<i64: 1, 1>}, {transform_indices = @transform_7, window_bounds = array<i64: 256, 1>}]} {
    %c0 = arith.constant 0 : index
    %c0_0 = arith.constant 0 : index
    %0 = vector.load %arg1[%c0, %c0_0] : memref<256x256xbf16, #tpu.memory_space<vmem>>, vector<256x256xbf16>
    %1 = arith.extf %0 : vector<256x256xbf16> to vector<256x256xf32>
    %cst = arith.constant 0.000000e+00 : f32
    %2 = vector.broadcast %cst : f32 to vector<256x256xf32>
    %3 = arith.cmpf ogt, %1, %2 : vector<256x256xf32>
    %4 = math.exp %1 : vector<256x256xf32>
    %cst_1 = arith.constant 1.000000e+00 : f32
    %5 = vector.broadcast %cst_1 : f32 to vector<256x256xf32>
    %6 = arith.subf %4, %5 : vector<256x256xf32>
    %cst_2 = arith.constant 1.67326319 : f32
    %7 = vector.broadcast %cst_2 : f32 to vector<256x256xf32>
    %8 = arith.mulf %7, %6 : vector<256x256xf32>
    %9 = arith.select %3, %1, %8 : vector<256x256xi1>, vector<256x256xf32>
    %cst_3 = arith.constant 1.05070102 : f32
    %10 = vector.broadcast %cst_3 : f32 to vector<256x256xf32>
    %11 = arith.mulf %10, %9 : vector<256x256xf32>
    %12 = arith.truncf %11 : vector<256x256xf32> to vector<256x256xbf16>
    %c0_4 = arith.constant 0 : index
    %c0_5 = arith.constant 0 : index
    %13 = vector.load %arg2[%c0_4, %c0_5] : memref<256x128xbf16, #tpu.memory_space<vmem>>, vector<256x128xbf16>
    %cst_6 = arith.constant dense<0.000000e+00> : vector<256x128xf32>
    %14 = tpu.matmul %12, %13, %cst_6 {dimension_numbers = #tpu.dot_dimension_numbers<[1], [0], [0], [1], [0, 0, 1, 1], [], []>} : vector<256x256xbf16>, vector<256x128xbf16>, vector<256x128xf32> -> vector<256x128xf32>
    %c0_7 = arith.constant 0 : index
    %c0_8 = arith.constant 0 : index
    %15 = vector.load %arg3[%c0_7, %c0_8] : memref<1x128xf32, #tpu.memory_space<vmem>>, vector<1x128xf32>
    %16 = vector.broadcast %15 : vector<1x128xf32> to vector<256x128xf32>
    %17 = arith.addf %14, %16 : vector<256x128xf32>
    %cst_9 = arith.constant 0.000000e+00 : f32
    %18 = vector.broadcast %cst_9 : f32 to vector<256x128xf32>
    %19 = arith.cmpf ogt, %17, %18 : vector<256x128xf32>
    %20 = math.exp %17 : vector<256x128xf32>
    %cst_10 = arith.constant 1.000000e+00 : f32
    %21 = vector.broadcast %cst_10 : f32 to vector<256x128xf32>
    %22 = arith.subf %20, %21 : vector<256x128xf32>
    %cst_11 = arith.constant 1.67326319 : f32
    %23 = vector.broadcast %cst_11 : f32 to vector<256x128xf32>
    %24 = arith.mulf %23, %22 : vector<256x128xf32>
    %25 = arith.select %19, %17, %24 : vector<256x128xi1>, vector<256x128xf32>
    %cst_12 = arith.constant 1.05070102 : f32
    %26 = vector.broadcast %cst_12 : f32 to vector<256x128xf32>
    %27 = arith.mulf %26, %25 : vector<256x128xf32>
    %28 = arith.truncf %27 : vector<256x128xf32> to vector<256x128xbf16>
    %c0_13 = arith.constant 0 : index
    %c0_14 = arith.constant 0 : index
    %29 = vector.load %arg4[%c0_13, %c0_14] : memref<128x256xbf16, #tpu.memory_space<vmem>>, vector<128x256xbf16>
    %cst_15 = arith.constant dense<0.000000e+00> : vector<256x256xf32>
    %30 = tpu.matmul %28, %29, %cst_15 {dimension_numbers = #tpu.dot_dimension_numbers<[1], [0], [0], [1], [0, 0, 1, 1], [], []>} : vector<256x128xbf16>, vector<128x256xbf16>, vector<256x256xf32> -> vector<256x256xf32>
    %c0_16 = arith.constant 0 : index
    %c0_17 = arith.constant 0 : index
    %31 = vector.load %arg5[%c0_16, %c0_17] : memref<1x256xf32, #tpu.memory_space<vmem>>, vector<1x256xf32>
    %32 = vector.broadcast %31 : vector<1x256xf32> to vector<256x256xf32>
    %33 = arith.addf %30, %32 : vector<256x256xf32>
    %cst_18 = arith.constant 0.000000e+00 : f32
    %34 = vector.broadcast %cst_18 : f32 to vector<256x256xf32>
    %35 = arith.cmpf ogt, %33, %34 : vector<256x256xf32>
    %36 = math.exp %33 : vector<256x256xf32>
    %cst_19 = arith.constant 1.000000e+00 : f32
    %37 = vector.broadcast %cst_19 : f32 to vector<256x256xf32>
    %38 = arith.subf %36, %37 : vector<256x256xf32>
    %cst_20 = arith.constant 1.67326319 : f32
    %39 = vector.broadcast %cst_20 : f32 to vector<256x256xf32>
    %40 = arith.mulf %39, %38 : vector<256x256xf32>
    %41 = arith.select %35, %33, %40 : vector<256x256xi1>, vector<256x256xf32>
    %cst_21 = arith.constant 1.05070102 : f32
    %42 = vector.broadcast %cst_21 : f32 to vector<256x256xf32>
    %43 = arith.mulf %42, %41 : vector<256x256xf32>
    %c0_22 = arith.constant 0 : index
    %c0_23 = arith.constant 0 : index
    %44 = vector.load %arg6[%c0_22, %c0_23] : memref<1x256xf32, #tpu.memory_space<vmem>>, vector<1x256xf32>
    %45 = vector.broadcast %44 : vector<1x256xf32> to vector<256x256xf32>
    %46 = arith.mulf %43, %45 : vector<256x256xf32>
    %cst_24 = arith.constant dense<0.000000e+00> : vector<256xf32>
    %47 = vector.multi_reduction <add>, %46, %cst_24 [1] : vector<256x256xf32> to vector<256xf32>
    %48 = vector.shape_cast %47 : vector<256xf32> to vector<256x1xf32>
    %c0_25 = arith.constant 0 : index
    %c0_26 = arith.constant 0 : index
    %49 = vector.load %arg7[%c0_25, %c0_26] : memref<1x1xf32, #tpu.memory_space<vmem>>, vector<1x1xf32>
    %50 = vector.broadcast %49 : vector<1x1xf32> to vector<256x1xf32>
    %51 = arith.addf %48, %50 : vector<256x1xf32>
    %c0_27 = arith.constant 0 : index
    %c0_28 = arith.constant 0 : index
    %52 = vector.load %arg8[%c0_27, %c0_28] : memref<256x1xf32, #tpu.memory_space<vmem>>, vector<256x1xf32>
    tpu.vector_store %arg8[%c0_27, %c0_28], %51 {strides = array<i32>} : memref<256x1xf32, #tpu.memory_space<vmem>>, vector<256x1xf32>,
    return
  }
  func.func @transform_0(%arg0: i32) -> (i32, i32) {
    %c0_i32 = arith.constant 0 : i32
    %c0_i32_0 = arith.constant 0 : i32
    return %arg0, %c0_i32 : i32, i32
  }
  func.func @transform_1(%arg0: i32) -> (i32, i32) {
    %c0_i32 = arith.constant 0 : i32
    %c0_i32_0 = arith.constant 0 : i32
    %c0_i32_1 = arith.constant 0 : i32
    return %c0_i32, %c0_i32_0 : i32, i32
  }
  func.func @transform_2(%arg0: i32) -> (i32, i32) {
    %c0_i32 = arith.constant 0 : i32
    %c0_i32_0 = arith.constant 0 : i32
    %c0_i32_1 = arith.constant 0 : i32
    return %c0_i32, %c0_i32_0 : i32, i32
  }
  func.func @transform_3(%arg0: i32) -> (i32, i32) {
    %c0_i32 = arith.constant 0 : i32
    %c0_i32_0 = arith.constant 0 : i32
    %c0_i32_1 = arith.constant 0 : i32
    return %c0_i32, %c0_i32_0 : i32, i32
  }
  func.func @transform_4(%arg0: i32) -> (i32, i32) {
    %c0_i32 = arith.constant 0 : i32
    %c0_i32_0 = arith.constant 0 : i32
    %c0_i32_1 = arith.constant 0 : i32
    return %c0_i32, %c0_i32_0 : i32, i32
  }
  func.func @transform_5(%arg0: i32) -> (i32, i32) {
    %c0_i32 = arith.constant 0 : i32
    %c0_i32_0 = arith.constant 0 : i32
    %c0_i32_1 = arith.constant 0 : i32
    return %c0_i32, %c0_i32_0 : i32, i32
  }
  func.func @transform_6(%arg0: i32) -> (i32, i32) {
    %c0_i32 = arith.constant 0 : i32
    %c0_i32_0 = arith.constant 0 : i32
    %c0_i32_1 = arith.constant 0 : i32
    return %c0_i32, %c0_i32_0 : i32, i32
  }
  func.func @transform_7(%arg0: i32) -> (i32, i32) {
    %c0_i32 = arith.constant 0 : i32
    %c0_i32_0 = arith.constant 0 : i32
    return %arg0, %c0_i32 : i32, i32
  }
}

</mosaic_0001>

<llo_original>
// kernel: nn_layer_forward.1
$region0: #{nn_layer_forward.1}
  #allocation0 [shape = 'u32[]', space=smem, size = 0x4, offset = 0x4, fixed_abs, tag = 'smem constant byte address 0x4 - core index']
  #allocation1 [shape = 'u32[72,128]{1,0:T(1,128)}', space=vmem, size = 0x9000, scoped, tag = 'internal scratch']
  #allocation2 [shape = 'f32[1,1]{1,0:T(1,128)S(1)}', space=vmem, size = 0x200, scoped, tag = 'scoped memory for nn_layer_forward.1']
  %s0 = inlined_call_operand.vmem [shape: bf16[256,256], index: 0, kind: input, shape index: {}]
  %s1 = inlined_call_operand.vmem [shape: bf16[256,128], index: 1, kind: input, shape index: {}]
  %s2 = inlined_call_operand.vmem [shape: f32[1,128], index: 2, kind: input, shape index: {}]
  %s3 = inlined_call_operand.vmem [shape: bf16[128,256], index: 3, kind: input, shape index: {}]
  %s4 = inlined_call_operand.vmem [shape: f32[1,256], index: 4, kind: input, shape index: {}]
  %s5 = inlined_call_operand.vmem [shape: f32[1,256], index: 5, kind: input, shape index: {}]
  %s6 = inlined_call_operand.<no memory space> [shape: f32[1,1], index: 6, kind: input, shape index: {}]
  %s7 = inlined_call_operand.vmem [shape: f32[256,1], index: 7, kind: output, shape index: {}]
  %s8 = sld [smem:[#allocation0]]
  $region38: #{nn_layer_forward.1} parent=0
    _
  %s10 = ssub.s32 1, %s8
  %s11 = scalar_select 0, %s10, %s8
  %v12 = vstv %s6
  %13 = vst [vmem:[#allocation2] sm:$0x1] %v12
  // Predicated region
  $region2: #{nn_layer_forward.1} parent=0 // pred_check
    _
  $region3: #{nn_layer_forward.1} parent=0 // pred_check_branch
    %15 = sbr.rel (0) target = $region5
  $region4: #{nn_layer_forward.1} parent=0 // pred_region
    _
  $region5: #{nn_layer_forward.1} parent=0 // pred_fallthru
    _
  // Predicated region
  $region6: #{nn_layer_forward.1} parent=0 // pred_check
    _
  $region7: #{nn_layer_forward.1} parent=0 // pred_check_branch
    %17 = sbr.rel (0) target = $region9
  $region8: #{nn_layer_forward.1} parent=0 // pred_region
    _
  $region9: #{nn_layer_forward.1} parent=0 // pred_fallthru
    _
  // Predicated region
  $region10: #{nn_layer_forward.1} parent=0 // pred_check
    _
  $region11: #{nn_layer_forward.1} parent=0 // pred_check_branch
    %19 = sbr.rel (0) target = $region13
  $region12: #{nn_layer_forward.1} parent=0 // pred_region
    _
  $region13: #{nn_layer_forward.1} parent=0 // pred_fallthru
    _
  // Predicated region
  $region14: #{nn_layer_forward.1} parent=0 // pred_check
    _
  $region15: #{nn_layer_forward.1} parent=0 // pred_check_branch
    %21 = sbr.rel (0) target = $region17
  $region16: #{nn_layer_forward.1} parent=0 // pred_region
    _
  $region17: #{nn_layer_forward.1} parent=0 // pred_fallthru
    _
  // Predicated region
  $region18: #{nn_layer_forward.1} parent=0 // pred_check
    _
  $region19: #{nn_layer_forward.1} parent=0 // pred_check_branch
    %23 = sbr.rel (0) target = $region21
  $region20: #{nn_layer_forward.1} parent=0 // pred_region
    _
  $region21: #{nn_layer_forward.1} parent=0 // pred_fallthru
    _
  // Predicated region
  $region22: #{nn_layer_forward.1} parent=0 // pred_check
    _
  $region23: #{nn_layer_forward.1} parent=0 // pred_check_branch
    %25 = sbr.rel (0) target = $region25
  $region24: #{nn_layer_forward.1} parent=0 // pred_region
    _
  $region25: #{nn_layer_forward.1} parent=0 // pred_fallthru
    _
  // Predicated region
  $region26: #{nn_layer_forward.1} parent=0 // pred_check
    _
  $region27: #{nn_layer_forward.1} parent=0 // pred_check_branch
    %27 = sbr.rel (0) target = $region29
  $region28: #{nn_layer_forward.1} parent=0 // pred_region
    _
  $region29: #{nn_layer_forward.1} parent=0 // pred_fallthru
    _
  %v28 = vld [vmem:[%s0] sm:$0xff]
  %v29 = vld [vmem:[%s0 + $0x8] sm:$0xff]
  %v30 = vld [vmem:[%s0 + $0x10] sm:$0xff]
  %v31 = vld [vmem:[%s0 + $0x18] sm:$0xff]
  %v32 = vld [vmem:[%s0 + $0x20] sm:$0xff]
  %v33 = vld [vmem:[%s0 + $0x28] sm:$0xff]
  %v34 = vld [vmem:[%s0 + $0x30] sm:$0xff]
  %v35 = vld [vmem:[%s0 + $0x38] sm:$0xff]
  %v36 = vld [vmem:[%s0 + $0x40] sm:$0xff]
  %v37 = vld [vmem:[%s0 + $0x48] sm:$0xff]
  %v38 = vld [vmem:[%s0 + $0x50] sm:$0xff]
  %v39 = vld [vmem:[%s0 + $0x58] sm:$0xff]
  %v40 = vld [vmem:[%s0 + $0x60] sm:$0xff]
  %v41 = vld [vmem:[%s0 + $0x68] sm:$0xff]
  %v42 = vld [vmem:[%s0 + $0x70] sm:$0xff]
  %v43 = vld [vmem:[%s0 + $0x78] sm:$0xff]
  %v44 = vld [vmem:[%s0 + $0x80] sm:$0xff]
  %v45 = vld [vmem:[%s0 + $0x88] sm:$0xff]
  %v46 = vld [vmem:[%s0 + $0x90] sm:$0xff]
  %v47 = vld [vmem:[%s0 + $0x98] sm:$0xff]
  %v48 = vld [vmem:[%s0 + $0xa0] sm:$0xff]
  %v49 = vld [vmem:[%s0 + $0xa8] sm:$0xff]
  %v50 = vld [vmem:[%s0 + $0xb0] sm:$0xff]
  %v51 = vld [vmem:[%s0 + $0xb8] sm:$0xff]
  %v52 = vld [vmem:[%s0 + $0xc0] sm:$0xff]
  %v53 = vld [vmem:[%s0 + $0xc8] sm:$0xff]
  %v54 = vld [vmem:[%s0 + $0xd0] sm:$0xff]
  %v55 = vld [vmem:[%s0 + $0xd8] sm:$0xff]
  %v56 = vld [vmem:[%s0 + $0xe0] sm:$0xff]
  %v57 = vld [vmem:[%s0 + $0xe8] sm:$0xff]
  %v58 = vld [vmem:[%s0 + $0xf0] sm:$0xff]
  %v59 = vld [vmem:[%s0 + $0xf8] sm:$0xff]
  %v60 = vunpack.c.l.bf16 %v28
  %v61 = vunpack.c.h.bf16 %v28
  %v62 = vunpack.c.l.bf16 %v29
  %v63 = vunpack.c.h.bf16 %v29
  %v64 = vunpack.c.l.bf16 %v30
  %v65 = vunpack.c.h.bf16 %v30
  %v66 = vunpack.c.l.bf16 %v31
  %v67 = vunpack.c.h.bf16 %v31
  %v68 = vunpack.c.l.bf16 %v32
  %v69 = vunpack.c.h.bf16 %v32
  %v70 = vunpack.c.l.bf16 %v33
  %v71 = vunpack.c.h.bf16 %v33
  %v72 = vunpack.c.l.bf16 %v34
  %v73 = vunpack.c.h.bf16 %v34
  %v74 = vunpack.c.l.bf16 %v35
  %v75 = vunpack.c.h.bf16 %v35
  %v76 = vunpack.c.l.bf16 %v36
  %v77 = vunpack.c.h.bf16 %v36
  %v78 = vunpack.c.l.bf16 %v37
  %v79 = vunpack.c.h.bf16 %v37
  %v80 = vunpack.c.l.bf16 %v38
  %v81 = vunpack.c.h.bf16 %v38
  %v82 = vunpack.c.l.bf16 %v39
  %v83 = vunpack.c.h.bf16 %v39
  %v84 = vunpack.c.l.bf16 %v40
  %v85 = vunpack.c.h.bf16 %v40
  %v86 = vunpack.c.l.bf16 %v41
  %v87 = vunpack.c.h.bf16 %v41
  %v88 = vunpack.c.l.bf16 %v42
  %v89 = vunpack.c.h.bf16 %v42
  %v90 = vunpack.c.l.bf16 %v43
  %v91 = vunpack.c.h.bf16 %v43
  %v92 = vunpack.c.l.bf16 %v44
  %v93 = vunpack.c.h.bf16 %v44
  %v94 = vunpack.c.l.bf16 %v45
  %v95 = vunpack.c.h.bf16 %v45
  %v96 = vunpack.c.l.bf16 %v46
  %v97 = vunpack.c.h.bf16 %v46
  %v98 = vunpack.c.l.bf16 %v47
  %v99 = vunpack.c.h.bf16 %v47
  %v100 = vunpack.c.l.bf16 %v48
  %v101 = vunpack.c.h.bf16 %v48
  %v102 = vunpack.c.l.bf16 %v49
  %v103 = vunpack.c.h.bf16 %v49
  %v104 = vunpack.c.l.bf16 %v50
  %v105 = vunpack.c.h.bf16 %v50
  %v106 = vunpack.c.l.bf16 %v51
  %v107 = vunpack.c.h.bf16 %v51
  %v108 = vunpack.c.l.bf16 %v52
  %v109 = vunpack.c.h.bf16 %v52
  %v110 = vunpack.c.l.bf16 %v53
  %v111 = vunpack.c.h.bf16 %v53
  %v112 = vunpack.c.l.bf16 %v54
  %v113 = vunpack.c.h.bf16 %v54
  %v114 = vunpack.c.l.bf16 %v55
  %v115 = vunpack.c.h.bf16 %v55
  %v116 = vunpack.c.l.bf16 %v56
  %v117 = vunpack.c.h.bf16 %v56
  %v118 = vunpack.c.l.bf16 %v57
  %v119 = vunpack.c.h.bf16 %v57
  %v120 = vunpack.c.l.bf16 %v58
  %v121 = vunpack.c.h.bf16 %v58
  %v122 = vunpack.c.l.bf16 %v59
  %v123 = vunpack.c.h.bf16 %v59
  %vm124 = vcmp.gt.f32.partialorder %v60, 0.0
  %vm125 = vcmp.gt.f32.partialorder %v61, 0.0
  %vm126 = vcmp.gt.f32.partialorder %v62, 0.0
  %vm127 = vcmp.gt.f32.partialorder %v63, 0.0
  %vm128 = vcmp.gt.f32.partialorder %v64, 0.0
  %vm129 = vcmp.gt.f32.partialorder %v65, 0.0
  %vm130 = vcmp.gt.f32.partialorder %v66, 0.0
  %vm131 = vcmp.gt.f32.partialorder %v67, 0.0
  %vm132 = vcmp.gt.f32.partialorder %v68, 0.0
  %vm133 = vcmp.gt.f32.partialorder %v69, 0.0
  %vm134 = vcmp.gt.f32.partialorder %v70, 0.0
  %vm135 = vcmp.gt.f32.partialorder %v71, 0.0
  %vm136 = vcmp.gt.f32.partialorder %v72, 0.0
  %vm137 = vcmp.gt.f32.partialorder %v73, 0.0
  %vm138 = vcmp.gt.f32.partialorder %v74, 0.0
  %vm139 = vcmp.gt.f32.partialorder %v75, 0.0
  %vm140 = vcmp.gt.f32.partialorder %v76, 0.0
  %vm141 = vcmp.gt.f32.partialorder %v77, 0.0
  %vm142 = vcmp.gt.f32.partialorder %v78, 0.0
  %vm143 = vcmp.gt.f32.partialorder %v79, 0.0
  %vm144 = vcmp.gt.f32.partialorder %v80, 0.0
  %vm145 = vcmp.gt.f32.partialorder %v81, 0.0
  %vm146 = vcmp.gt.f32.partialorder %v82, 0.0
  %vm147 = vcmp.gt.f32.partialorder %v83, 0.0
  %vm148 = vcmp.gt.f32.partialorder %v84, 0.0
  %vm149 = vcmp.gt.f32.partialorder %v85, 0.0
  %vm150 = vcmp.gt.f32.partialorder %v86, 0.0
  %vm151 = vcmp.gt.f32.partialorder %v87, 0.0
  %vm152 = vcmp.gt.f32.partialorder %v88, 0.0
  %vm153 = vcmp.gt.f32.partialorder %v89, 0.0
  %vm154 = vcmp.gt.f32.partialorder %v90, 0.0
  %vm155 = vcmp.gt.f32.partialorder %v91, 0.0
  %vm156 = vcmp.gt.f32.partialorder %v92, 0.0
  %vm157 = vcmp.gt.f32.partialorder %v93, 0.0
  %vm158 = vcmp.gt.f32.partialorder %v94, 0.0
  %vm159 = vcmp.gt.f32.partialorder %v95, 0.0
  %vm160 = vcmp.gt.f32.partialorder %v96, 0.0
  %vm161 = vcmp.gt.f32.partialorder %v97, 0.0
  %vm162 = vcmp.gt.f32.partialorder %v98, 0.0
  %vm163 = vcmp.gt.f32.partialorder %v99, 0.0
  %vm164 = vcmp.gt.f32.partialorder %v100, 0.0
  %vm165 = vcmp.gt.f32.partialorder %v101, 0.0
  %vm166 = vcmp.gt.f32.partialorder %v102, 0.0
  %vm167 = vcmp.gt.f32.partialorder %v103, 0.0
  %vm168 = vcmp.gt.f32.partialorder %v104, 0.0
  %vm169 = vcmp.gt.f32.partialorder %v105, 0.0
  %vm170 = vcmp.gt.f32.partialorder %v106, 0.0
  %vm171 = vcmp.gt.f32.partialorder %v107, 0.0
  %vm172 = vcmp.gt.f32.partialorder %v108, 0.0
  %vm173 = vcmp.gt.f32.partialorder %v109, 0.0
  %vm174 = vcmp.gt.f32.partialorder %v110, 0.0
  %vm175 = vcmp.gt.f32.partialorder %v111, 0.0
  %vm176 = vcmp.gt.f32.partialorder %v112, 0.0
  %vm177 = vcmp.gt.f32.partialorder %v113, 0.0
  %vm178 = vcmp.gt.f32.partialorder %v114, 0.0
  %vm179 = vcmp.gt.f32.partialorder %v115, 0.0
  %vm180 = vcmp.gt.f32.partialorder %v116, 0.0
  %vm181 = vcmp.gt.f32.partialorder %v117, 0.0
  %vm182 = vcmp.gt.f32.partialorder %v118, 0.0
  %vm183 = vcmp.gt.f32.partialorder %v119, 0.0
  %vm184 = vcmp.gt.f32.partialorder %v120, 0.0
  %vm185 = vcmp.gt.f32.partialorder %v121, 0.0
  %vm186 = vcmp.gt.f32.partialorder %v122, 0.0
  %vm187 = vcmp.gt.f32.partialorder %v123, 0.0
  %v188 = vmul.f32 %v60, 1.442695
  %v189 = vpow.pop %v188
  %v190 = vmul.f32 %v61, 1.442695
  %v191 = vpow.pop %v190
  %v192 = vmul.f32 %v62, 1.442695
  %v193 = vpow.pop %v192
  %v194 = vmul.f32 %v63, 1.442695
  %v195 = vpow.pop %v194
  %v196 = vmul.f32 %v64, 1.442695
  %v197 = vpow.pop %v196
  %v198 = vmul.f32 %v65, 1.442695
  %v199 = vpow.pop %v198
  %v200 = vmul.f32 %v66, 1.442695
  %v201 = vpow.pop %v200
  %v202 = vmul.f32 %v67, 1.442695
  %v203 = vpow.pop %v202
  %v204 = vmul.f32 %v68, 1.442695
  %v205 = vpow.pop %v204
  %v206 = vmul.f32 %v69, 1.442695
  %v207 = vpow.pop %v206
  %v208 = vmul.f32 %v70, 1.442695
  %v209 = vpow.pop %v208
  %v210 = vmul.f32 %v71, 1.442695
  %v211 = vpow.pop %v210
  %v212 = vmul.f32 %v72, 1.442695
  %v213 = vpow.pop %v212
  %v214 = vmul.f32 %v73, 1.442695
  %v215 = vpow.pop %v214
  %v216 = vmul.f32 %v74, 1.442695
  %v217 = vpow.pop %v216
  %v218 = vmul.f32 %v75, 1.442695
  %v219 = vpow.pop %v218
  %v220 = vmul.f32 %v76, 1.442695
  %v221 = vpow.pop %v220
  %v222 = vmul.f32 %v77, 1.442695
  %v223 = vpow.pop %v222
  %v224 = vmul.f32 %v78, 1.442695
  %v225 = vpow.pop %v224
  %v226 = vmul.f32 %v79, 1.442695
  %v227 = vpow.pop %v226
  %v228 = vmul.f32 %v80, 1.442695
  %v229 = vpow.pop %v228
  %v230 = vmul.f32 %v81, 1.442695
  %v231 = vpow.pop %v230
  %v232 = vmul.f32 %v82, 1.442695
  %v233 = vpow.pop %v232
  %v234 = vmul.f32 %v83, 1.442695
  %v235 = vpow.pop %v234
  %v236 = vmul.f32 %v84, 1.442695
  %v237 = vpow.pop %v236
  %v238 = vmul.f32 %v85, 1.442695
  %v239 = vpow.pop %v238
  %v240 = vmul.f32 %v86, 1.442695
  %v241 = vpow.pop %v240
  %v242 = vmul.f32 %v87, 1.442695
  %v243 = vpow.pop %v242
  %v244 = vmul.f32 %v88, 1.442695
  %v245 = vpow.pop %v244
  %v246 = vmul.f32 %v89, 1.442695
  %v247 = vpow.pop %v246
  %v248 = vmul.f32 %v90, 1.442695
  %v249 = vpow.pop %v248
  %v250 = vmul.f32 %v91, 1.442695
  %v251 = vpow.pop %v250
  %v252 = vmul.f32 %v92, 1.442695
  %v253 = vpow.pop %v252
  %v254 = vmul.f32 %v93, 1.442695
  %v255 = vpow.pop %v254
  %v256 = vmul.f32 %v94, 1.442695
  %v257 = vpow.pop %v256
  %v258 = vmul.f32 %v95, 1.442695
  %v259 = vpow.pop %v258
  %v260 = vmul.f32 %v96, 1.442695
  %v261 = vpow.pop %v260
  %v262 = vmul.f32 %v97, 1.442695
  %v263 = vpow.pop %v262
  %v264 = vmul.f32 %v98, 1.442695
  %v265 = vpow.pop %v264
  %v266 = vmul.f32 %v99, 1.442695
  %v267 = vpow.pop %v266
  %v268 = vmul.f32 %v100, 1.442695
  %v269 = vpow.pop %v268
  %v270 = vmul.f32 %v101, 1.442695
  %v271 = vpow.pop %v270
  %v272 = vmul.f32 %v102, 1.442695
  %v273 = vpow.pop %v272
  %v274 = vmul.f32 %v103, 1.442695
  %v275 = vpow.pop %v274
  %v276 = vmul.f32 %v104, 1.442695
  %v277 = vpow.pop %v276
  %v278 = vmul.f32 %v105, 1.442695
  %v279 = vpow.pop %v278
  %v280 = vmul.f32 %v106, 1.442695
  %v281 = vpow.pop %v280
  %v282 = vmul.f32 %v107, 1.442695
  %v283 = vpow.pop %v282
  %v284 = vmul.f32 %v108, 1.442695
  %v285 = vpow.pop %v284
  %v286 = vmul.f32 %v109, 1.442695
  %v287 = vpow.pop %v286
  %v288 = vmul.f32 %v110, 1.442695
  %v289 = vpow.pop %v288
  %v290 = vmul.f32 %v111, 1.442695
  %v291 = vpow.pop %v290
  %v292 = vmul.f32 %v112, 1.442695
  %v293 = vpow.pop %v292
  %v294 = vmul.f32 %v113, 1.442695
  %v295 = vpow.pop %v294
  %v296 = vmul.f32 %v114, 1.442695
  %v297 = vpow.pop %v296
  %v298 = vmul.f32 %v115, 1.442695
  %v299 = vpow.pop %v298
  %v300 = vmul.f32 %v116, 1.442695
  %v301 = vpow.pop %v300
  %v302 = vmul.f32 %v117, 1.442695
  %v303 = vpow.pop %v302
  %v304 = vmul.f32 %v118, 1.442695
  %v305 = vpow.pop %v304
  %v306 = vmul.f32 %v119, 1.442695
  %v307 = vpow.pop %v306
  %v308 = vmul.f32 %v120, 1.442695
  %v309 = vpow.pop %v308
  %v310 = vmul.f32 %v121, 1.442695
  %v311 = vpow.pop %v310
  %v312 = vmul.f32 %v122, 1.442695
  %v313 = vpow.pop %v312
  %v314 = vmul.f32 %v123, 1.442695
  %v315 = vpow.pop %v314
  %v316 = vsub.f32 %v189, 1.0
  %v317 = vsub.f32 %v191, 1.0
  %v318 = vsub.f32 %v193, 1.0
  %v319 = vsub.f32 %v195, 1.0
  %v320 = vsub.f32 %v197, 1.0
  %v321 = vsub.f32 %v199, 1.0
  %v322 = vsub.f32 %v201, 1.0
  %v323 = vsub.f32 %v203, 1.0
  %v324 = vsub.f32 %v205, 1.0
  %v325 = vsub.f32 %v207, 1.0
  %v326 = vsub.f32 %v209, 1.0
  %v327 = vsub.f32 %v211, 1.0
  %v328 = vsub.f32 %v213, 1.0
  %v329 = vsub.f32 %v215, 1.0
  %v330 = vsub.f32 %v217, 1.0
  %v331 = vsub.f32 %v219, 1.0
  %v332 = vsub.f32 %v221, 1.0
  %v333 = vsub.f32 %v223, 1.0
  %v334 = vsub.f32 %v225, 1.0
  %v335 = vsub.f32 %v227, 1.0
  %v336 = vsub.f32 %v229, 1.0
  %v337 = vsub.f32 %v231, 1.0
  %v338 = vsub.f32 %v233, 1.0
  %v339 = vsub.f32 %v235, 1.0
  %v340 = vsub.f32 %v237, 1.0
  %v341 = vsub.f32 %v239, 1.0
  %v342 = vsub.f32 %v241, 1.0
  %v343 = vsub.f32 %v243, 1.0
  %v344 = vsub.f32 %v245, 1.0
  %v345 = vsub.f32 %v247, 1.0
  %v346 = vsub.f32 %v249, 1.0
  %v347 = vsub.f32 %v251, 1.0
  %v348 = vsub.f32 %v253, 1.0
  %v349 = vsub.f32 %v255, 1.0
  %v350 = vsub.f32 %v257, 1.0
  %v351 = vsub.f32 %v259, 1.0
  %v352 = vsub.f32 %v261, 1.0
  %v353 = vsub.f32 %v263, 1.0
  %v354 = vsub.f32 %v265, 1.0
  %v355 = vsub.f32 %v267, 1.0
  %v356 = vsub.f32 %v269, 1.0
  %v357 = vsub.f32 %v271, 1.0
  %v358 = vsub.f32 %v273, 1.0
  %v359 = vsub.f32 %v275, 1.0
  %v360 = vsub.f32 %v277, 1.0
  %v361 = vsub.f32 %v279, 1.0
  %v362 = vsub.f32 %v281, 1.0
  %v363 = vsub.f32 %v283, 1.0
  %v364 = vsub.f32 %v285, 1.0
  %v365 = vsub.f32 %v287, 1.0
  %v366 = vsub.f32 %v289, 1.0
  %v367 = vsub.f32 %v291, 1.0
  %v368 = vsub.f32 %v293, 1.0
  %v369 = vsub.f32 %v295, 1.0
  %v370 = vsub.f32 %v297, 1.0
  %v371 = vsub.f32 %v299, 1.0
  %v372 = vsub.f32 %v301, 1.0
  %v373 = vsub.f32 %v303, 1.0
  %v374 = vsub.f32 %v305, 1.0
  %v375 = vsub.f32 %v307, 1.0
  %v376 = vsub.f32 %v309, 1.0
  %v377 = vsub.f32 %v311, 1.0
  %v378 = vsub.f32 %v313, 1.0
  %v379 = vsub.f32 %v315, 1.0
  %v380 = vmul.f32 %v316, 1.6732632
  %v381 = vmul.f32 %v317, 1.6732632
  %v382 = vmul.f32 %v318, 1.6732632
  %v383 = vmul.f32 %v319, 1.6732632
  %v384 = vmul.f32 %v320, 1.6732632
  %v385 = vmul.f32 %v321, 1.6732632
  %v386 = vmul.f32 %v322, 1.6732632
  %v387 = vmul.f32 %v323, 1.6732632
  %v388 = vmul.f32 %v324, 1.6732632
  %v389 = vmul.f32 %v325, 1.6732632
  %v390 = vmul.f32 %v326, 1.6732632
  %v391 = vmul.f32 %v327, 1.6732632
  %v392 = vmul.f32 %v328, 1.6732632
  %v393 = vmul.f32 %v329, 1.6732632
  %v394 = vmul.f32 %v330, 1.6732632
  %v395 = vmul.f32 %v331, 1.6732632
  %v396 = vmul.f32 %v332, 1.6732632
  %v397 = vmul.f32 %v333, 1.6732632
  %v398 = vmul.f32 %v334, 1.6732632
  %v399 = vmul.f32 %v335, 1.6732632
  %v400 = vmul.f32 %v336, 1.6732632
  %v401 = vmul.f32 %v337, 1.6732632
  %v402 = vmul.f32 %v338, 1.6732632
  %v403 = vmul.f32 %v339, 1.6732632
  %v404 = vmul.f32 %v340, 1.6732632
  %v405 = vmul.f32 %v341, 1.6732632
  %v406 = vmul.f32 %v342, 1.6732632
  %v407 = vmul.f32 %v343, 1.6732632
  %v408 = vmul.f32 %v344, 1.6732632
  %v409 = vmul.f32 %v345, 1.6732632
  %v410 = vmul.f32 %v346, 1.6732632
  %v411 = vmul.f32 %v347, 1.6732632
  %v412 = vmul.f32 %v348, 1.6732632
  %v413 = vmul.f32 %v349, 1.6732632
  %v414 = vmul.f32 %v350, 1.6732632
  %v415 = vmul.f32 %v351, 1.6732632
  %v416 = vmul.f32 %v352, 1.6732632
  %v417 = vmul.f32 %v353, 1.6732632
  %v418 = vmul.f32 %v354, 1.6732632
  %v419 = vmul.f32 %v355, 1.6732632
  %v420 = vmul.f32 %v356, 1.6732632
  %v421 = vmul.f32 %v357, 1.6732632
  %v422 = vmul.f32 %v358, 1.6732632
  %v423 = vmul.f32 %v359, 1.6732632
  %v424 = vmul.f32 %v360, 1.6732632
  %v425 = vmul.f32 %v361, 1.6732632
  %v426 = vmul.f32 %v362, 1.6732632
  %v427 = vmul.f32 %v363, 1.6732632
  %v428 = vmul.f32 %v364, 1.6732632
  %v429 = vmul.f32 %v365, 1.6732632
  %v430 = vmul.f32 %v366, 1.6732632
  %v431 = vmul.f32 %v367, 1.6732632
  %v432 = vmul.f32 %v368, 1.6732632
  %v433 = vmul.f32 %v369, 1.6732632
  %v434 = vmul.f32 %v370, 1.6732632
  %v435 = vmul.f32 %v371, 1.6732632
  %v436 = vmul.f32 %v372, 1.6732632
  %v437 = vmul.f32 %v373, 1.6732632
  %v438 = vmul.f32 %v374, 1.6732632
  %v439 = vmul.f32 %v375, 1.6732632
  %v440 = vmul.f32 %v376, 1.6732632
  %v441 = vmul.f32 %v377, 1.6732632
  %v442 = vmul.f32 %v378, 1.6732632
  %v443 = vmul.f32 %v379, 1.6732632
  %v444 = vsel %vm124, %v60, %v380
  %v445 = vsel %vm125, %v61, %v381
  %v446 = vsel %vm126, %v62, %v382
  %v447 = vsel %vm127, %v63, %v383
  %v448 = vsel %vm128, %v64, %v384
  %v449 = vsel %vm129, %v65, %v385
  %v450 = vsel %vm130, %v66, %v386
  %v451 = vsel %vm131, %v67, %v387
  %v452 = vsel %vm132, %v68, %v388
  %v453 = vsel %vm133, %v69, %v389
  %v454 = vsel %vm134, %v70, %v390
  %v455 = vsel %vm135, %v71, %v391
  %v456 = vsel %vm136, %v72, %v392
  %v457 = vsel %vm137, %v73, %v393
  %v458 = vsel %vm138, %v74, %v394
  %v459 = vsel %vm139, %v75, %v395
  %v460 = vsel %vm140, %v76, %v396
  %v461 = vsel %vm141, %v77, %v397
  %v462 = vsel %vm142, %v78, %v398
  %v463 = vsel %vm143, %v79, %v399
  %v464 = vsel %vm144, %v80, %v400
  %v465 = vsel %vm145, %v81, %v401
  %v466 = vsel %vm146, %v82, %v402
  %v467 = vsel %vm147, %v83, %v403
  %v468 = vsel %vm148, %v84, %v404
  %v469 = vsel %vm149, %v85, %v405
  %v470 = vsel %vm150, %v86, %v406
  %v471 = vsel %vm151, %v87, %v407
  %v472 = vsel %vm152, %v88, %v408
  %v473 = vsel %vm153, %v89, %v409
  %v474 = vsel %vm154, %v90, %v410
  %v475 = vsel %vm155, %v91, %v411
  %v476 = vsel %vm156, %v92, %v412
  %v477 = vsel %vm157, %v93, %v413
  %v478 = vsel %vm158, %v94, %v414
  %v479 = vsel %vm159, %v95, %v415
  %v480 = vsel %vm160, %v96, %v416
  %v481 = vsel %vm161, %v97, %v417
  %v482 = vsel %vm162, %v98, %v418
  %v483 = vsel %vm163, %v99, %v419
  %v484 = vsel %vm164, %v100, %v420
  %v485 = vsel %vm165, %v101, %v421
  %v486 = vsel %vm166, %v102, %v422
  %v487 = vsel %vm167, %v103, %v423
  %v488 = vsel %vm168, %v104, %v424
  %v489 = vsel %vm169, %v105, %v425
  %v490 = vsel %vm170, %v106, %v426
  %v491 = vsel %vm171, %v107, %v427
  %v492 = vsel %vm172, %v108, %v428
  %v493 = vsel %vm173, %v109, %v429
  %v494 = vsel %vm174, %v110, %v430
  %v495 = vsel %vm175, %v111, %v431
  %v496 = vsel %vm176, %v112, %v432
  %v497 = vsel %vm177, %v113, %v433
  %v498 = vsel %vm178, %v114, %v434
  %v499 = vsel %vm179, %v115, %v435
  %v500 = vsel %vm180, %v116, %v436
  %v501 = vsel %vm181, %v117, %v437
  %v502 = vsel %vm182, %v118, %v438
  %v503 = vsel %vm183, %v119, %v439
  %v504 = vsel %vm184, %v120, %v440
  %v505 = vsel %vm185, %v121, %v441
  %v506 = vsel %vm186, %v122, %v442
  %v507 = vsel %vm187, %v123, %v443
  %v508 = vmul.f32 %v444, 1.050701
  %v509 = vmul.f32 %v445, 1.050701
  %v510 = vmul.f32 %v446, 1.050701
  %v511 = vmul.f32 %v447, 1.050701
  %v512 = vmul.f32 %v448, 1.050701
  %v513 = vmul.f32 %v449, 1.050701
  %v514 = vmul.f32 %v450, 1.050701
  %v515 = vmul.f32 %v451, 1.050701
  %v516 = vmul.f32 %v452, 1.050701
  %v517 = vmul.f32 %v453, 1.050701
  %v518 = vmul.f32 %v454, 1.050701
  %v519 = vmul.f32 %v455, 1.050701
  %v520 = vmul.f32 %v456, 1.050701
  %v521 = vmul.f32 %v457, 1.050701
  %v522 = vmul.f32 %v458, 1.050701
  %v523 = vmul.f32 %v459, 1.050701
  %v524 = vmul.f32 %v460, 1.050701
  %v525 = vmul.f32 %v461, 1.050701
  %v526 = vmul.f32 %v462, 1.050701
  %v527 = vmul.f32 %v463, 1.050701
  %v528 = vmul.f32 %v464, 1.050701
  %v529 = vmul.f32 %v465, 1.050701
  %v530 = vmul.f32 %v466, 1.050701
  %v531 = vmul.f32 %v467, 1.050701
  %v532 = vmul.f32 %v468, 1.050701
  %v533 = vmul.f32 %v469, 1.050701
  %v534 = vmul.f32 %v470, 1.050701
  %v535 = vmul.f32 %v471, 1.050701
  %v536 = vmul.f32 %v472, 1.050701
  %v537 = vmul.f32 %v473, 1.050701
  %v538 = vmul.f32 %v474, 1.050701
  %v539 = vmul.f32 %v475, 1.050701
  %v540 = vmul.f32 %v476, 1.050701
  %v541 = vmul.f32 %v477, 1.050701
  %v542 = vmul.f32 %v478, 1.050701
  %v543 = vmul.f32 %v479, 1.050701
  %v544 = vmul.f32 %v480, 1.050701
  %v545 = vmul.f32 %v481, 1.050701
  %v546 = vmul.f32 %v482, 1.050701
  %v547 = vmul.f32 %v483, 1.050701
  %v548 = vmul.f32 %v484, 1.050701
  %v549 = vmul.f32 %v485, 1.050701
  %v550 = vmul.f32 %v486, 1.050701
  %v551 = vmul.f32 %v487, 1.050701
  %v552 = vmul.f32 %v488, 1.050701
  %v553 = vmul.f32 %v489, 1.050701
  %v554 = vmul.f32 %v490, 1.050701
  %v555 = vmul.f32 %v491, 1.050701
  %v556 = vmul.f32 %v492, 1.050701
  %v557 = vmul.f32 %v493, 1.050701
  %v558 = vmul.f32 %v494, 1.050701
  %v559 = vmul.f32 %v495, 1.050701
  %v560 = vmul.f32 %v496, 1.050701
  %v561 = vmul.f32 %v497, 1.050701
  %v562 = vmul.f32 %v498, 1.050701
  %v563 = vmul.f32 %v499, 1.050701
  %v564 = vmul.f32 %v500, 1.050701
  %v565 = vmul.f32 %v501, 1.050701
  %v566 = vmul.f32 %v502, 1.050701
  %v567 = vmul.f32 %v503, 1.050701
  %v568 = vmul.f32 %v504, 1.050701
  %v569 = vmul.f32 %v505, 1.050701
  %v570 = vmul.f32 %v506, 1.050701
  %v571 = vmul.f32 %v507, 1.050701
  %v572 = vpack.c.bf16 %v510, %v508
  %v573 = vpack.c.bf16 %v511, %v509
  %v574 = vpack.c.bf16 %v514, %v512
  %v575 = vpack.c.bf16 %v515, %v513
  %v576 = vpack.c.bf16 %v518, %v516
  %v577 = vpack.c.bf16 %v519, %v517
  %v578 = vpack.c.bf16 %v522, %v520
  %v579 = vpack.c.bf16 %v523, %v521
  %v580 = vpack.c.bf16 %v526, %v524
  %v581 = vpack.c.bf16 %v527, %v525
  %v582 = vpack.c.bf16 %v530, %v528
  %v583 = vpack.c.bf16 %v531, %v529
  %v584 = vpack.c.bf16 %v534, %v532
  %v585 = vpack.c.bf16 %v535, %v533
  %v586 = vpack.c.bf16 %v538, %v536
  %v587 = vpack.c.bf16 %v539, %v537
  %v588 = vpack.c.bf16 %v542, %v540
  %v589 = vpack.c.bf16 %v543, %v541
  %v590 = vpack.c.bf16 %v546, %v544
  %v591 = vpack.c.bf16 %v547, %v545
  %v592 = vpack.c.bf16 %v550, %v548
  %v593 = vpack.c.bf16 %v551, %v549
  %v594 = vpack.c.bf16 %v554, %v552
  %v595 = vpack.c.bf16 %v555, %v553
  %v596 = vpack.c.bf16 %v558, %v556
  %v597 = vpack.c.bf16 %v559, %v557
  %v598 = vpack.c.bf16 %v562, %v560
  %v599 = vpack.c.bf16 %v563, %v561
  %v600 = vpack.c.bf16 %v566, %v564
  %v601 = vpack.c.bf16 %v567, %v565
  %v602 = vpack.c.bf16 %v570, %v568
  %v603 = vpack.c.bf16 %v571, %v569
  %v604 = vld [vmem:[%s1] sm:$0xf]
  %v605 = vld [vmem:[%s1 + $0x4] sm:$0xf]
  %v606 = vld [vmem:[%s1 + $0x8] sm:$0xf]
  %v607 = vld [vmem:[%s1 + $0xc] sm:$0xf]
  %v608 = vld [vmem:[%s1 + $0x10] sm:$0xf]
  %v609 = vld [vmem:[%s1 + $0x14] sm:$0xf]
  %v610 = vld [vmem:[%s1 + $0x18] sm:$0xf]
  %v611 = vld [vmem:[%s1 + $0x1c] sm:$0xf]
  %v612 = vld [vmem:[%s1 + $0x20] sm:$0xf]
  %v613 = vld [vmem:[%s1 + $0x24] sm:$0xf]
  %v614 = vld [vmem:[%s1 + $0x28] sm:$0xf]
  %v615 = vld [vmem:[%s1 + $0x2c] sm:$0xf]
  %v616 = vld [vmem:[%s1 + $0x30] sm:$0xf]
  %v617 = vld [vmem:[%s1 + $0x34] sm:$0xf]
  %v618 = vld [vmem:[%s1 + $0x38] sm:$0xf]
  %v619 = vld [vmem:[%s1 + $0x3c] sm:$0xf]
  %v620 = vld [vmem:[%s1 + $0x40] sm:$0xf]
  %v621 = vld [vmem:[%s1 + $0x44] sm:$0xf]
  %v622 = vld [vmem:[%s1 + $0x48] sm:$0xf]
  %v623 = vld [vmem:[%s1 + $0x4c] sm:$0xf]
  %v624 = vld [vmem:[%s1 + $0x50] sm:$0xf]
  %v625 = vld [vmem:[%s1 + $0x54] sm:$0xf]
  %v626 = vld [vmem:[%s1 + $0x58] sm:$0xf]
  %v627 = vld [vmem:[%s1 + $0x5c] sm:$0xf]
  %v628 = vld [vmem:[%s1 + $0x60] sm:$0xf]
  %v629 = vld [vmem:[%s1 + $0x64] sm:$0xf]
  %v630 = vld [vmem:[%s1 + $0x68] sm:$0xf]
  %v631 = vld [vmem:[%s1 + $0x6c] sm:$0xf]
  %v632 = vld [vmem:[%s1 + $0x70] sm:$0xf]
  %v633 = vld [vmem:[%s1 + $0x74] sm:$0xf]
  %v634 = vld [vmem:[%s1 + $0x78] sm:$0xf]
  %v635 = vld [vmem:[%s1 + $0x7c] sm:$0xf]
  %v636 = vld [vmem:[%s2] sm:$0x1]
  %v638 = vperm.slane %v636, 0
  %v672 = vunpack.c.l.b16 %v604
  %v673 = vunpack.c.l.b16 %v605
  %v674 = vunpack.c.l.b16 %v606
  %v675 = vunpack.c.l.b16 %v607
  %v676 = vunpack.c.l.b16 %v608
  %v677 = vunpack.c.l.b16 %v609
  %v678 = vunpack.c.l.b16 %v610
  %v679 = vunpack.c.l.b16 %v611
  %v680 = vunpack.c.l.b16 %v612
  %v681 = vunpack.c.l.b16 %v613
  %v682 = vunpack.c.l.b16 %v614
  %v683 = vunpack.c.l.b16 %v615
  %v684 = vunpack.c.l.b16 %v616
  %v685 = vunpack.c.l.b16 %v617
  %v686 = vunpack.c.l.b16 %v618
  %v687 = vunpack.c.l.b16 %v619
  %v688 = vunpack.c.l.b16 %v620
  %v689 = vunpack.c.l.b16 %v621
  %v690 = vunpack.c.l.b16 %v622
  %v691 = vunpack.c.l.b16 %v623
  %v692 = vunpack.c.l.b16 %v624
  %v693 = vunpack.c.l.b16 %v625
  %v694 = vunpack.c.l.b16 %v626
  %v695 = vunpack.c.l.b16 %v627
  %v696 = vunpack.c.l.b16 %v628
  %v697 = vunpack.c.l.b16 %v629
  %v698 = vunpack.c.l.b16 %v630
  %v699 = vunpack.c.l.b16 %v631
  %v700 = vunpack.c.l.b16 %v632
  %v701 = vunpack.c.l.b16 %v633
  %v702 = vunpack.c.l.b16 %v634
  %v703 = vunpack.c.l.b16 %v635
  %v704 = vpack.c.b16 %v673, %v672
  %v705 = vpack.c.b16 %v675, %v674
  %v706 = vpack.c.b16 %v677, %v676
  %v707 = vpack.c.b16 %v679, %v678
  %v708 = vpack.c.b16 %v681, %v680
  %v709 = vpack.c.b16 %v683, %v682
  %v710 = vpack.c.b16 %v685, %v684
  %v711 = vpack.c.b16 %v687, %v686
  %v712 = vpack.c.b16 %v689, %v688
  %v713 = vpack.c.b16 %v691, %v690
  %v714 = vpack.c.b16 %v693, %v692
  %v715 = vpack.c.b16 %v695, %v694
  %v716 = vpack.c.b16 %v697, %v696
  %v717 = vpack.c.b16 %v699, %v698
  %v718 = vpack.c.b16 %v701, %v700
  %v719 = vpack.c.b16 %v703, %v702
  %736 = vmatpush.bf16.msra.mxu0 %v711
  %737 = vmatpush.bf16.msra.mxu0 %v710
  %738 = vmatpush.bf16.msra.mxu0 %v709
  %739 = vmatpush.bf16.msra.mxu0 %v708
  %740 = vmatpush.bf16.msra.mxu0 %v707
  %741 = vmatpush.bf16.msra.mxu0 %v706
  %742 = vmatpush.bf16.msra.mxu0 %v705
  %743 = vmatpush.bf16.msra.mxu0 %v704
  %744 = vmatmul.bf16.gmra.mxu0 %v572
  %v745 = vpop.f32.mrf.mxu0
  %v746 = vadd.f32 %v638, %v745
  %v747 = vpop.f32.mrf.mxu0
  %v748 = vadd.f32 %v638, %v747
  %749 = vmatmul.bf16.gmra.mxu0 %v574
  %v750 = vpop.f32.mrf.mxu0
  %v751 = vadd.f32 %v638, %v750
  %v752 = vpop.f32.mrf.mxu0
  %v753 = vadd.f32 %v638, %v752
  %754 = vmatmul.bf16.gmra.mxu0 %v576
  %v755 = vpop.f32.mrf.mxu0
  %v756 = vadd.f32 %v638, %v755
  %v757 = vpop.f32.mrf.mxu0
  %v758 = vadd.f32 %v638, %v757
  %759 = vmatmul.bf16.gmra.mxu0 %v578
  %v760 = vpop.f32.mrf.mxu0
  %v761 = vadd.f32 %v638, %v760
  %v762 = vpop.f32.mrf.mxu0
  %v763 = vadd.f32 %v638, %v762
  %764 = vmatmul.bf16.gmra.mxu0 %v580
  %v765 = vpop.f32.mrf.mxu0
  %v766 = vadd.f32 %v638, %v765
  %v767 = vpop.f32.mrf.mxu0
  %v768 = vadd.f32 %v638, %v767
  %769 = vmatmul.bf16.gmra.mxu0 %v582
  %v770 = vpop.f32.mrf.mxu0
  %v771 = vadd.f32 %v638, %v770
  %v772 = vpop.f32.mrf.mxu0
  %v773 = vadd.f32 %v638, %v772
  %774 = vmatmul.bf16.gmra.mxu0 %v584
  %v775 = vpop.f32.mrf.mxu0
  %v776 = vadd.f32 %v638, %v775
  %v777 = vpop.f32.mrf.mxu0
  %v778 = vadd.f32 %v638, %v777
  %779 = vmatmul.bf16.gmra.mxu0 %v586
  %v780 = vpop.f32.mrf.mxu0
  %v781 = vadd.f32 %v638, %v780
  %v782 = vpop.f32.mrf.mxu0
  %v783 = vadd.f32 %v638, %v782
  %784 = vmatmul.bf16.gmra.mxu0 %v588
  %v785 = vpop.f32.mrf.mxu0
  %v786 = vadd.f32 %v638, %v785
  %v787 = vpop.f32.mrf.mxu0
  %v788 = vadd.f32 %v638, %v787
  %789 = vmatmul.bf16.gmra.mxu0 %v590
  %v790 = vpop.f32.mrf.mxu0
  %v791 = vadd.f32 %v638, %v790
  %v792 = vpop.f32.mrf.mxu0
  %v793 = vadd.f32 %v638, %v792
  %794 = vmatmul.bf16.gmra.mxu0 %v592
  %v795 = vpop.f32.mrf.mxu0
  %v796 = vadd.f32 %v638, %v795
  %v797 = vpop.f32.mrf.mxu0
  %v798 = vadd.f32 %v638, %v797
  %799 = vmatmul.bf16.gmra.mxu0 %v594
  %v800 = vpop.f32.mrf.mxu0
  %v801 = vadd.f32 %v638, %v800
  %v802 = vpop.f32.mrf.mxu0
  %v803 = vadd.f32 %v638, %v802
  %804 = vmatmul.bf16.gmra.mxu0 %v596
  %v805 = vpop.f32.mrf.mxu0
  %v806 = vadd.f32 %v638, %v805
  %v807 = vpop.f32.mrf.mxu0
  %v808 = vadd.f32 %v638, %v807
  %809 = vmatmul.bf16.gmra.mxu0 %v598
  %v810 = vpop.f32.mrf.mxu0
  %v811 = vadd.f32 %v638, %v810
  %v812 = vpop.f32.mrf.mxu0
  %v813 = vadd.f32 %v638, %v812
  %814 = vmatmul.bf16.gmra.mxu0 %v600
  %v815 = vpop.f32.mrf.mxu0
  %v816 = vadd.f32 %v638, %v815
  %v817 = vpop.f32.mrf.mxu0
  %v818 = vadd.f32 %v638, %v817
  %819 = vmatmul.bf16.gmra.mxu0 %v602
  %v820 = vpop.f32.mrf.mxu0
  %v821 = vadd.f32 %v638, %v820
  %v822 = vpop.f32.mrf.mxu0
  %v823 = vadd.f32 %v638, %v822
  %824 = vdwg.mxu0
  %825 = vmatpush.bf16.msra.mxu0 %v719
  %826 = vmatpush.bf16.msra.mxu0 %v718
  %827 = vmatpush.bf16.msra.mxu0 %v717
  %828 = vmatpush.bf16.msra.mxu0 %v716
  %829 = vmatpush.bf16.msra.mxu0 %v715
  %830 = vmatpush.bf16.msra.mxu0 %v714
  %831 = vmatpush.bf16.msra.mxu0 %v713
  %832 = vmatpush.bf16.msra.mxu0 %v712
  %833 = vmatmul.bf16.gmra.mxu0 %v573
  %v834 = vpop.f32.mrf.mxu0
  %v835 = vadd.f32 %v746, %v834
  %v836 = vpop.f32.mrf.mxu0
  %v837 = vadd.f32 %v748, %v836
  %838 = vmatmul.bf16.gmra.mxu0 %v575
  %v839 = vpop.f32.mrf.mxu0
  %v840 = vadd.f32 %v751, %v839
  %v841 = vpop.f32.mrf.mxu0
  %v842 = vadd.f32 %v753, %v841
  %843 = vmatmul.bf16.gmra.mxu0 %v577
  %v844 = vpop.f32.mrf.mxu0
  %v845 = vadd.f32 %v756, %v844
  %v846 = vpop.f32.mrf.mxu0
  %v847 = vadd.f32 %v758, %v846
  %848 = vmatmul.bf16.gmra.mxu0 %v579
  %v849 = vpop.f32.mrf.mxu0
  %v850 = vadd.f32 %v761, %v849
  %v851 = vpop.f32.mrf.mxu0
  %v852 = vadd.f32 %v763, %v851
  %853 = vmatmul.bf16.gmra.mxu0 %v581
  %v854 = vpop.f32.mrf.mxu0
  %v855 = vadd.f32 %v766, %v854
  %v856 = vpop.f32.mrf.mxu0
  %v857 = vadd.f32 %v768, %v856
  %858 = vmatmul.bf16.gmra.mxu0 %v583
  %v859 = vpop.f32.mrf.mxu0
  %v860 = vadd.f32 %v771, %v859
  %v861 = vpop.f32.mrf.mxu0
  %v862 = vadd.f32 %v773, %v861
  %863 = vmatmul.bf16.gmra.mxu0 %v585
  %v864 = vpop.f32.mrf.mxu0
  %v865 = vadd.f32 %v776, %v864
  %v866 = vpop.f32.mrf.mxu0
  %v867 = vadd.f32 %v778, %v866
  %868 = vmatmul.bf16.gmra.mxu0 %v587
  %v869 = vpop.f32.mrf.mxu0
  %v870 = vadd.f32 %v781, %v869
  %v871 = vpop.f32.mrf.mxu0
  %v872 = vadd.f32 %v783, %v871
  %873 = vmatmul.bf16.gmra.mxu0 %v589
  %v874 = vpop.f32.mrf.mxu0
  %v875 = vadd.f32 %v786, %v874
  %v876 = vpop.f32.mrf.mxu0
  %v877 = vadd.f32 %v788, %v876
  %878 = vmatmul.bf16.gmra.mxu0 %v591
  %v879 = vpop.f32.mrf.mxu0
  %v880 = vadd.f32 %v791, %v879
  %v881 = vpop.f32.mrf.mxu0
  %v882 = vadd.f32 %v793, %v881
  %883 = vmatmul.bf16.gmra.mxu0 %v593
  %v884 = vpop.f32.mrf.mxu0
  %v885 = vadd.f32 %v796, %v884
  %v886 = vpop.f32.mrf.mxu0
  %v887 = vadd.f32 %v798, %v886
  %888 = vmatmul.bf16.gmra.mxu0 %v595
  %v889 = vpop.f32.mrf.mxu0
  %v890 = vadd.f32 %v801, %v889
  %v891 = vpop.f32.mrf.mxu0
  %v892 = vadd.f32 %v803, %v891
  %893 = vmatmul.bf16.gmra.mxu0 %v597
  %v894 = vpop.f32.mrf.mxu0
  %v895 = vadd.f32 %v806, %v894
  %v896 = vpop.f32.mrf.mxu0
  %v897 = vadd.f32 %v808, %v896
  %898 = vmatmul.bf16.gmra.mxu0 %v599
  %v899 = vpop.f32.mrf.mxu0
  %v900 = vadd.f32 %v811, %v899
  %v901 = vpop.f32.mrf.mxu0
  %v902 = vadd.f32 %v813, %v901
  %903 = vmatmul.bf16.gmra.mxu0 %v601
  %v904 = vpop.f32.mrf.mxu0
  %v905 = vadd.f32 %v816, %v904
  %v906 = vpop.f32.mrf.mxu0
  %v907 = vadd.f32 %v818, %v906
  %908 = vmatmul.bf16.gmra.mxu0 %v603
  %v909 = vpop.f32.mrf.mxu0
  %v910 = vadd.f32 %v821, %v909
  %v911 = vpop.f32.mrf.mxu0
  %v912 = vadd.f32 %v823, %v911
  %913 = vdwg.mxu0
  %vm914 = vcmp.gt.f32.partialorder %v835, 0.0
  %vm915 = vcmp.gt.f32.partialorder %v837, 0.0
  %vm916 = vcmp.gt.f32.partialorder %v840, 0.0
  %vm917 = vcmp.gt.f32.partialorder %v842, 0.0
  %vm918 = vcmp.gt.f32.partialorder %v845, 0.0
  %vm919 = vcmp.gt.f32.partialorder %v847, 0.0
  %vm920 = vcmp.gt.f32.partialorder %v850, 0.0
  %vm921 = vcmp.gt.f32.partialorder %v852, 0.0
  %vm922 = vcmp.gt.f32.partialorder %v855, 0.0
  %vm923 = vcmp.gt.f32.partialorder %v857, 0.0
  %vm924 = vcmp.gt.f32.partialorder %v860, 0.0
  %vm925 = vcmp.gt.f32.partialorder %v862, 0.0
  %vm926 = vcmp.gt.f32.partialorder %v865, 0.0
  %vm927 = vcmp.gt.f32.partialorder %v867, 0.0
  %vm928 = vcmp.gt.f32.partialorder %v870, 0.0
  %vm929 = vcmp.gt.f32.partialorder %v872, 0.0
  %vm930 = vcmp.gt.f32.partialorder %v875, 0.0
  %vm931 = vcmp.gt.f32.partialorder %v877, 0.0
  %vm932 = vcmp.gt.f32.partialorder %v880, 0.0
  %vm933 = vcmp.gt.f32.partialorder %v882, 0.0
  %vm934 = vcmp.gt.f32.partialorder %v885, 0.0
  %vm935 = vcmp.gt.f32.partialorder %v887, 0.0
  %vm936 = vcmp.gt.f32.partialorder %v890, 0.0
  %vm937 = vcmp.gt.f32.partialorder %v892, 0.0
  %vm938 = vcmp.gt.f32.partialorder %v895, 0.0
  %vm939 = vcmp.gt.f32.partialorder %v897, 0.0
  %vm940 = vcmp.gt.f32.partialorder %v900, 0.0
  %vm941 = vcmp.gt.f32.partialorder %v902, 0.0
  %vm942 = vcmp.gt.f32.partialorder %v905, 0.0
  %vm943 = vcmp.gt.f32.partialorder %v907, 0.0
  %vm944 = vcmp.gt.f32.partialorder %v910, 0.0
  %vm945 = vcmp.gt.f32.partialorder %v912, 0.0
  %v946 = vmul.f32 %v835, 1.442695
  %v947 = vpow.pop %v946
  %v948 = vmul.f32 %v837, 1.442695
  %v949 = vpow.pop %v948
  %v950 = vmul.f32 %v840, 1.442695
  %v951 = vpow.pop %v950
  %v952 = vmul.f32 %v842, 1.442695
  %v953 = vpow.pop %v952
  %v954 = vmul.f32 %v845, 1.442695
  %v955 = vpow.pop %v954
  %v956 = vmul.f32 %v847, 1.442695
  %v957 = vpow.pop %v956
  %v958 = vmul.f32 %v850, 1.442695
  %v959 = vpow.pop %v958
  %v960 = vmul.f32 %v852, 1.442695
  %v961 = vpow.pop %v960
  %v962 = vmul.f32 %v855, 1.442695
  %v963 = vpow.pop %v962
  %v964 = vmul.f32 %v857, 1.442695
  %v965 = vpow.pop %v964
  %v966 = vmul.f32 %v860, 1.442695
  %v967 = vpow.pop %v966
  %v968 = vmul.f32 %v862, 1.442695
  %v969 = vpow.pop %v968
  %v970 = vmul.f32 %v865, 1.442695
  %v971 = vpow.pop %v970
  %v972 = vmul.f32 %v867, 1.442695
  %v973 = vpow.pop %v972
  %v974 = vmul.f32 %v870, 1.442695
  %v975 = vpow.pop %v974
  %v976 = vmul.f32 %v872, 1.442695
  %v977 = vpow.pop %v976
  %v978 = vmul.f32 %v875, 1.442695
  %v979 = vpow.pop %v978
  %v980 = vmul.f32 %v877, 1.442695
  %v981 = vpow.pop %v980
  %v982 = vmul.f32 %v880, 1.442695
  %v983 = vpow.pop %v982
  %v984 = vmul.f32 %v882, 1.442695
  %v985 = vpow.pop %v984
  %v986 = vmul.f32 %v885, 1.442695
  %v987 = vpow.pop %v986
  %v988 = vmul.f32 %v887, 1.442695
  %v989 = vpow.pop %v988
  %v990 = vmul.f32 %v890, 1.442695
  %v991 = vpow.pop %v990
  %v992 = vmul.f32 %v892, 1.442695
  %v993 = vpow.pop %v992
  %v994 = vmul.f32 %v895, 1.442695
  %v995 = vpow.pop %v994
  %v996 = vmul.f32 %v897, 1.442695
  %v997 = vpow.pop %v996
  %v998 = vmul.f32 %v900, 1.442695
  %v999 = vpow.pop %v998
  %v1000 = vmul.f32 %v902, 1.442695
  %v1001 = vpow.pop %v1000
  %v1002 = vmul.f32 %v905, 1.442695
  %v1003 = vpow.pop %v1002
  %v1004 = vmul.f32 %v907, 1.442695
  %v1005 = vpow.pop %v1004
  %v1006 = vmul.f32 %v910, 1.442695
  %v1007 = vpow.pop %v1006
  %v1008 = vmul.f32 %v912, 1.442695
  %v1009 = vpow.pop %v1008
  %v1010 = vsub.f32 %v947, 1.0
  %v1011 = vsub.f32 %v949, 1.0
  %v1012 = vsub.f32 %v951, 1.0
  %v1013 = vsub.f32 %v953, 1.0
  %v1014 = vsub.f32 %v955, 1.0
  %v1015 = vsub.f32 %v957, 1.0
  %v1016 = vsub.f32 %v959, 1.0
  %v1017 = vsub.f32 %v961, 1.0
  %v1018 = vsub.f32 %v963, 1.0
  %v1019 = vsub.f32 %v965, 1.0
  %v1020 = vsub.f32 %v967, 1.0
  %v1021 = vsub.f32 %v969, 1.0
  %v1022 = vsub.f32 %v971, 1.0
  %v1023 = vsub.f32 %v973, 1.0
  %v1024 = vsub.f32 %v975, 1.0
  %v1025 = vsub.f32 %v977, 1.0
  %v1026 = vsub.f32 %v979, 1.0
  %v1027 = vsub.f32 %v981, 1.0
  %v1028 = vsub.f32 %v983, 1.0
  %v1029 = vsub.f32 %v985, 1.0
  %v1030 = vsub.f32 %v987, 1.0
  %v1031 = vsub.f32 %v989, 1.0
  %v1032 = vsub.f32 %v991, 1.0
  %v1033 = vsub.f32 %v993, 1.0
  %v1034 = vsub.f32 %v995, 1.0
  %v1035 = vsub.f32 %v997, 1.0
  %v1036 = vsub.f32 %v999, 1.0
  %v1037 = vsub.f32 %v1001, 1.0
  %v1038 = vsub.f32 %v1003, 1.0
  %v1039 = vsub.f32 %v1005, 1.0
  %v1040 = vsub.f32 %v1007, 1.0
  %v1041 = vsub.f32 %v1009, 1.0
  %v1042 = vmul.f32 %v1010, 1.6732632
  %v1043 = vmul.f32 %v1011, 1.6732632
  %v1044 = vmul.f32 %v1012, 1.6732632
  %v1045 = vmul.f32 %v1013, 1.6732632
  %v1046 = vmul.f32 %v1014, 1.6732632
  %v1047 = vmul.f32 %v1015, 1.6732632
  %v1048 = vmul.f32 %v1016, 1.6732632
  %v1049 = vmul.f32 %v1017, 1.6732632
  %v1050 = vmul.f32 %v1018, 1.6732632
  %v1051 = vmul.f32 %v1019, 1.6732632
  %v1052 = vmul.f32 %v1020, 1.6732632
  %v1053 = vmul.f32 %v1021, 1.6732632
  %v1054 = vmul.f32 %v1022, 1.6732632
  %v1055 = vmul.f32 %v1023, 1.6732632
  %v1056 = vmul.f32 %v1024, 1.6732632
  %v1057 = vmul.f32 %v1025, 1.6732632
  %v1058 = vmul.f32 %v1026, 1.6732632
  %v1059 = vmul.f32 %v1027, 1.6732632
  %v1060 = vmul.f32 %v1028, 1.6732632
  %v1061 = vmul.f32 %v1029, 1.6732632
  %v1062 = vmul.f32 %v1030, 1.6732632
  %v1063 = vmul.f32 %v1031, 1.6732632
  %v1064 = vmul.f32 %v1032, 1.6732632
  %v1065 = vmul.f32 %v1033, 1.6732632
  %v1066 = vmul.f32 %v1034, 1.6732632
  %v1067 = vmul.f32 %v1035, 1.6732632
  %v1068 = vmul.f32 %v1036, 1.6732632
  %v1069 = vmul.f32 %v1037, 1.6732632
  %v1070 = vmul.f32 %v1038, 1.6732632
  %v1071 = vmul.f32 %v1039, 1.6732632
  %v1072 = vmul.f32 %v1040, 1.6732632
  %v1073 = vmul.f32 %v1041, 1.6732632
  %v1074 = vsel %vm914, %v835, %v1042
  %v1075 = vsel %vm915, %v837, %v1043
  %v1076 = vsel %vm916, %v840, %v1044
  %v1077 = vsel %vm917, %v842, %v1045
  %v1078 = vsel %vm918, %v845, %v1046
  %v1079 = vsel %vm919, %v847, %v1047
  %v1080 = vsel %vm920, %v850, %v1048
  %v1081 = vsel %vm921, %v852, %v1049
  %v1082 = vsel %vm922, %v855, %v1050
  %v1083 = vsel %vm923, %v857, %v1051
  %v1084 = vsel %vm924, %v860, %v1052
  %v1085 = vsel %vm925, %v862, %v1053
  %v1086 = vsel %vm926, %v865, %v1054
  %v1087 = vsel %vm927, %v867, %v1055
  %v1088 = vsel %vm928, %v870, %v1056
  %v1089 = vsel %vm929, %v872, %v1057
  %v1090 = vsel %vm930, %v875, %v1058
  %v1091 = vsel %vm931, %v877, %v1059
  %v1092 = vsel %vm932, %v880, %v1060
  %v1093 = vsel %vm933, %v882, %v1061
  %v1094 = vsel %vm934, %v885, %v1062
  %v1095 = vsel %vm935, %v887, %v1063
  %v1096 = vsel %vm936, %v890, %v1064
  %v1097 = vsel %vm937, %v892, %v1065
  %v1098 = vsel %vm938, %v895, %v1066
  %v1099 = vsel %vm939, %v897, %v1067
  %v1100 = vsel %vm940, %v900, %v1068
  %v1101 = vsel %vm941, %v902, %v1069
  %v1102 = vsel %vm942, %v905, %v1070
  %v1103 = vsel %vm943, %v907, %v1071
  %v1104 = vsel %vm944, %v910, %v1072
  %v1105 = vsel %vm945, %v912, %v1073
  %v1106 = vmul.f32 %v1074, 1.050701
  %v1107 = vmul.f32 %v1075, 1.050701
  %v1108 = vmul.f32 %v1076, 1.050701
  %v1109 = vmul.f32 %v1077, 1.050701
  %v1110 = vmul.f32 %v1078, 1.050701
  %v1111 = vmul.f32 %v1079, 1.050701
  %v1112 = vmul.f32 %v1080, 1.050701
  %v1113 = vmul.f32 %v1081, 1.050701
  %v1114 = vmul.f32 %v1082, 1.050701
  %v1115 = vmul.f32 %v1083, 1.050701
  %v1116 = vmul.f32 %v1084, 1.050701
  %v1117 = vmul.f32 %v1085, 1.050701
  %v1118 = vmul.f32 %v1086, 1.050701
  %v1119 = vmul.f32 %v1087, 1.050701
  %v1120 = vmul.f32 %v1088, 1.050701
  %v1121 = vmul.f32 %v1089, 1.050701
  %v1122 = vmul.f32 %v1090, 1.050701
  %v1123 = vmul.f32 %v1091, 1.050701
  %v1124 = vmul.f32 %v1092, 1.050701
  %v1125 = vmul.f32 %v1093, 1.050701
  %v1126 = vmul.f32 %v1094, 1.050701
  %v1127 = vmul.f32 %v1095, 1.050701
  %v1128 = vmul.f32 %v1096, 1.050701
  %v1129 = vmul.f32 %v1097, 1.050701
  %v1130 = vmul.f32 %v1098, 1.050701
  %v1131 = vmul.f32 %v1099, 1.050701
  %v1132 = vmul.f32 %v1100, 1.050701
  %v1133 = vmul.f32 %v1101, 1.050701
  %v1134 = vmul.f32 %v1102, 1.050701
  %v1135 = vmul.f32 %v1103, 1.050701
  %v1136 = vmul.f32 %v1104, 1.050701
  %v1137 = vmul.f32 %v1105, 1.050701
  %v1138 = vpack.c.bf16 %v1107, %v1106
  %v1139 = vpack.c.bf16 %v1109, %v1108
  %v1140 = vpack.c.bf16 %v1111, %v1110
  %v1141 = vpack.c.bf16 %v1113, %v1112
  %v1142 = vpack.c.bf16 %v1115, %v1114
  %v1143 = vpack.c.bf16 %v1117, %v1116
  %v1144 = vpack.c.bf16 %v1119, %v1118
  %v1145 = vpack.c.bf16 %v1121, %v1120
  %v1146 = vpack.c.bf16 %v1123, %v1122
  %v1147 = vpack.c.bf16 %v1125, %v1124
  %v1148 = vpack.c.bf16 %v1127, %v1126
  %v1149 = vpack.c.bf16 %v1129, %v1128
  %v1150 = vpack.c.bf16 %v1131, %v1130
  %v1151 = vpack.c.bf16 %v1133, %v1132
  %v1152 = vpack.c.bf16 %v1135, %v1134
  %v1153 = vpack.c.bf16 %v1137, %v1136
  %v1154 = vld [vmem:[%s3] sm:$0xff]
  %v1155 = vld [vmem:[%s3 + $0x8] sm:$0xff]
  %v1156 = vld [vmem:[%s3 + $0x10] sm:$0xff]
  %v1157 = vld [vmem:[%s3 + $0x18] sm:$0xff]
  %v1158 = vld [vmem:[%s3 + $0x20] sm:$0xff]
  %v1159 = vld [vmem:[%s3 + $0x28] sm:$0xff]
  %v1160 = vld [vmem:[%s3 + $0x30] sm:$0xff]
  %v1161 = vld [vmem:[%s3 + $0x38] sm:$0xff]
  %v1162 = vld [vmem:[%s3 + $0x40] sm:$0xff]
  %v1163 = vld [vmem:[%s3 + $0x48] sm:$0xff]
  %v1164 = vld [vmem:[%s3 + $0x50] sm:$0xff]
  %v1165 = vld [vmem:[%s3 + $0x58] sm:$0xff]
  %v1166 = vld [vmem:[%s3 + $0x60] sm:$0xff]
  %v1167 = vld [vmem:[%s3 + $0x68] sm:$0xff]
  %v1168 = vld [vmem:[%s3 + $0x70] sm:$0xff]
  %v1169 = vld [vmem:[%s3 + $0x78] sm:$0xff]
  %v1170 = vld [vmem:[%s4] sm:$0x3]
  %v1172 = vperm.slane %v1170, 0
  %v1173 = vperm.slane %v1170, 1
  %v1192 = vunpack.c.l.b16 %v1154
  %v1193 = vunpack.c.h.b16 %v1154
  %v1194 = vunpack.c.l.b16 %v1155
  %v1195 = vunpack.c.h.b16 %v1155
  %v1196 = vunpack.c.l.b16 %v1156
  %v1197 = vunpack.c.h.b16 %v1156
  %v1198 = vunpack.c.l.b16 %v1157
  %v1199 = vunpack.c.h.b16 %v1157
  %v1200 = vunpack.c.l.b16 %v1158
  %v1201 = vunpack.c.h.b16 %v1158
  %v1202 = vunpack.c.l.b16 %v1159
  %v1203 = vunpack.c.h.b16 %v1159
  %v1204 = vunpack.c.l.b16 %v1160
  %v1205 = vunpack.c.h.b16 %v1160
  %v1206 = vunpack.c.l.b16 %v1161
  %v1207 = vunpack.c.h.b16 %v1161
  %v1208 = vunpack.c.l.b16 %v1162
  %v1209 = vunpack.c.h.b16 %v1162
  %v1210 = vunpack.c.l.b16 %v1163
  %v1211 = vunpack.c.h.b16 %v1163
  %v1212 = vunpack.c.l.b16 %v1164
  %v1213 = vunpack.c.h.b16 %v1164
  %v1214 = vunpack.c.l.b16 %v1165
  %v1215 = vunpack.c.h.b16 %v1165
  %v1216 = vunpack.c.l.b16 %v1166
  %v1217 = vunpack.c.h.b16 %v1166
  %v1218 = vunpack.c.l.b16 %v1167
  %v1219 = vunpack.c.h.b16 %v1167
  %v1220 = vunpack.c.l.b16 %v1168
  %v1221 = vunpack.c.h.b16 %v1168
  %v1222 = vunpack.c.l.b16 %v1169
  %v1223 = vunpack.c.h.b16 %v1169
  %v1224 = vpack.c.b16 %v1194, %v1192
  %v1225 = vpack.c.b16 %v1195, %v1193
  %v1226 = vpack.c.b16 %v1198, %v1196
  %v1227 = vpack.c.b16 %v1199, %v1197
  %v1228 = vpack.c.b16 %v1202, %v1200
  %v1229 = vpack.c.b16 %v1203, %v1201
  %v1230 = vpack.c.b16 %v1206, %v1204
  %v1231 = vpack.c.b16 %v1207, %v1205
  %v1232 = vpack.c.b16 %v1210, %v1208
  %v1233 = vpack.c.b16 %v1211, %v1209
  %v1234 = vpack.c.b16 %v1214, %v1212
  %v1235 = vpack.c.b16 %v1215, %v1213
  %v1236 = vpack.c.b16 %v1218, %v1216
  %v1237 = vpack.c.b16 %v1219, %v1217
  %v1238 = vpack.c.b16 %v1222, %v1220
  %v1239 = vpack.c.b16 %v1223, %v1221
  %1256 = vmatpush.bf16.msra.mxu0 %v1238
  %1257 = vmatpush.bf16.msra.mxu0 %v1236
  %1258 = vmatpush.bf16.msra.mxu0 %v1234
  %1259 = vmatpush.bf16.msra.mxu0 %v1232
  %1260 = vmatpush.bf16.msra.mxu0 %v1230
  %1261 = vmatpush.bf16.msra.mxu0 %v1228
  %1262 = vmatpush.bf16.msra.mxu0 %v1226
  %1263 = vmatpush.bf16.msra.mxu0 %v1224
  %1264 = vmatmul.bf16.gmra.mxu0 %v1138
  %v1265 = vpop.f32.mrf.mxu0
  %v1266 = vadd.f32 %v1172, %v1265
  %v1267 = vpop.f32.mrf.mxu0
  %v1268 = vadd.f32 %v1172, %v1267
  %1269 = vmatmul.bf16.gmra.mxu0 %v1139
  %v1270 = vpop.f32.mrf.mxu0
  %v1271 = vadd.f32 %v1172, %v1270
  %v1272 = vpop.f32.mrf.mxu0
  %v1273 = vadd.f32 %v1172, %v1272
  %1274 = vmatmul.bf16.gmra.mxu0 %v1140
  %v1275 = vpop.f32.mrf.mxu0
  %v1276 = vadd.f32 %v1172, %v1275
  %v1277 = vpop.f32.mrf.mxu0
  %v1278 = vadd.f32 %v1172, %v1277
  %1279 = vmatmul.bf16.gmra.mxu0 %v1141
  %v1280 = vpop.f32.mrf.mxu0
  %v1281 = vadd.f32 %v1172, %v1280
  %v1282 = vpop.f32.mrf.mxu0
  %v1283 = vadd.f32 %v1172, %v1282
  %1284 = vmatmul.bf16.gmra.mxu0 %v1142
  %v1285 = vpop.f32.mrf.mxu0
  %v1286 = vadd.f32 %v1172, %v1285
  %v1287 = vpop.f32.mrf.mxu0
  %v1288 = vadd.f32 %v1172, %v1287
  %1289 = vmatmul.bf16.gmra.mxu0 %v1143
  %v1290 = vpop.f32.mrf.mxu0
  %v1291 = vadd.f32 %v1172, %v1290
  %v1292 = vpop.f32.mrf.mxu0
  %v1293 = vadd.f32 %v1172, %v1292
  %1294 = vmatmul.bf16.gmra.mxu0 %v1144
  %v1295 = vpop.f32.mrf.mxu0
  %v1296 = vadd.f32 %v1172, %v1295
  %v1297 = vpop.f32.mrf.mxu0
  %v1298 = vadd.f32 %v1172, %v1297
  %1299 = vmatmul.bf16.gmra.mxu0 %v1145
  %v1300 = vpop.f32.mrf.mxu0
  %v1301 = vadd.f32 %v1172, %v1300
  %v1302 = vpop.f32.mrf.mxu0
  %v1303 = vadd.f32 %v1172, %v1302
  %1304 = vmatmul.bf16.gmra.mxu0 %v1146
  %v1305 = vpop.f32.mrf.mxu0
  %v1306 = vadd.f32 %v1172, %v1305
  %v1307 = vpop.f32.mrf.mxu0
  %v1308 = vadd.f32 %v1172, %v1307
  %1309 = vmatmul.bf16.gmra.mxu0 %v1147
  %v1310 = vpop.f32.mrf.mxu0
  %v1311 = vadd.f32 %v1172, %v1310
  %v1312 = vpop.f32.mrf.mxu0
  %v1313 = vadd.f32 %v1172, %v1312
  %1314 = vmatmul.bf16.gmra.mxu0 %v1148
  %v1315 = vpop.f32.mrf.mxu0
  %v1316 = vadd.f32 %v1172, %v1315
  %v1317 = vpop.f32.mrf.mxu0
  %v1318 = vadd.f32 %v1172, %v1317
  %1319 = vmatmul.bf16.gmra.mxu0 %v1149
  %v1320 = vpop.f32.mrf.mxu0
  %v1321 = vadd.f32 %v1172, %v1320
  %v1322 = vpop.f32.mrf.mxu0
  %v1323 = vadd.f32 %v1172, %v1322
  %1324 = vmatmul.bf16.gmra.mxu0 %v1150
  %v1325 = vpop.f32.mrf.mxu0
  %v1326 = vadd.f32 %v1172, %v1325
  %v1327 = vpop.f32.mrf.mxu0
  %v1328 = vadd.f32 %v1172, %v1327
  %1329 = vmatmul.bf16.gmra.mxu0 %v1151
  %v1330 = vpop.f32.mrf.mxu0
  %v1331 = vadd.f32 %v1172, %v1330
  %v1332 = vpop.f32.mrf.mxu0
  %v1333 = vadd.f32 %v1172, %v1332
  %1334 = vmatmul.bf16.gmra.mxu0 %v1152
  %v1335 = vpop.f32.mrf.mxu0
  %v1336 = vadd.f32 %v1172, %v1335
  %v1337 = vpop.f32.mrf.mxu0
  %v1338 = vadd.f32 %v1172, %v1337
  %1339 = vmatmul.bf16.gmra.mxu0 %v1153
  %v1340 = vpop.f32.mrf.mxu0
  %v1341 = vadd.f32 %v1172, %v1340
  %v1342 = vpop.f32.mrf.mxu0
  %v1343 = vadd.f32 %v1172, %v1342
  %1344 = vdwg.mxu0
  %1345 = vmatpush.bf16.msra.mxu0 %v1239
  %1346 = vmatpush.bf16.msra.mxu0 %v1237
  %1347 = vmatpush.bf16.msra.mxu0 %v1235
  %1348 = vmatpush.bf16.msra.mxu0 %v1233
  %1349 = vmatpush.bf16.msra.mxu0 %v1231
  %1350 = vmatpush.bf16.msra.mxu0 %v1229
  %1351 = vmatpush.bf16.msra.mxu0 %v1227
  %1352 = vmatpush.bf16.msra.mxu0 %v1225
  %1353 = vmatmul.bf16.gmra.mxu0 %v1138
  %v1354 = vpop.f32.mrf.mxu0
  %v1355 = vadd.f32 %v1173, %v1354
  %v1356 = vpop.f32.mrf.mxu0
  %v1357 = vadd.f32 %v1173, %v1356
  %1358 = vmatmul.bf16.gmra.mxu0 %v1139
  %v1359 = vpop.f32.mrf.mxu0
  %v1360 = vadd.f32 %v1173, %v1359
  %v1361 = vpop.f32.mrf.mxu0
  %v1362 = vadd.f32 %v1173, %v1361
  %1363 = vmatmul.bf16.gmra.mxu0 %v1140
  %v1364 = vpop.f32.mrf.mxu0
  %v1365 = vadd.f32 %v1173, %v1364
  %v1366 = vpop.f32.mrf.mxu0
  %v1367 = vadd.f32 %v1173, %v1366
  %1368 = vmatmul.bf16.gmra.mxu0 %v1141
  %v1369 = vpop.f32.mrf.mxu0
  %v1370 = vadd.f32 %v1173, %v1369
  %v1371 = vpop.f32.mrf.mxu0
  %v1372 = vadd.f32 %v1173, %v1371
  %1373 = vmatmul.bf16.gmra.mxu0 %v1142
  %v1374 = vpop.f32.mrf.mxu0
  %v1375 = vadd.f32 %v1173, %v1374
  %v1376 = vpop.f32.mrf.mxu0
  %v1377 = vadd.f32 %v1173, %v1376
  %1378 = vmatmul.bf16.gmra.mxu0 %v1143
  %v1379 = vpop.f32.mrf.mxu0
  %v1380 = vadd.f32 %v1173, %v1379
  %v1381 = vpop.f32.mrf.mxu0
  %v1382 = vadd.f32 %v1173, %v1381
  %1383 = vmatmul.bf16.gmra.mxu0 %v1144
  %v1384 = vpop.f32.mrf.mxu0
  %v1385 = vadd.f32 %v1173, %v1384
  %v1386 = vpop.f32.mrf.mxu0
  %v1387 = vadd.f32 %v1173, %v1386
  %1388 = vmatmul.bf16.gmra.mxu0 %v1145
  %v1389 = vpop.f32.mrf.mxu0
  %v1390 = vadd.f32 %v1173, %v1389
  %v1391 = vpop.f32.mrf.mxu0
  %v1392 = vadd.f32 %v1173, %v1391
  %1393 = vmatmul.bf16.gmra.mxu0 %v1146
  %v1394 = vpop.f32.mrf.mxu0
  %v1395 = vadd.f32 %v1173, %v1394
  %v1396 = vpop.f32.mrf.mxu0
  %v1397 = vadd.f32 %v1173, %v1396
  %1398 = vmatmul.bf16.gmra.mxu0 %v1147
  %v1399 = vpop.f32.mrf.mxu0
  %v1400 = vadd.f32 %v1173, %v1399
  %v1401 = vpop.f32.mrf.mxu0
  %v1402 = vadd.f32 %v1173, %v1401
  %1403 = vmatmul.bf16.gmra.mxu0 %v1148
  %v1404 = vpop.f32.mrf.mxu0
  %v1405 = vadd.f32 %v1173, %v1404
  %v1406 = vpop.f32.mrf.mxu0
  %v1407 = vadd.f32 %v1173, %v1406
  %1408 = vmatmul.bf16.gmra.mxu0 %v1149
  %v1409 = vpop.f32.mrf.mxu0
  %v1410 = vadd.f32 %v1173, %v1409
  %v1411 = vpop.f32.mrf.mxu0
  %v1412 = vadd.f32 %v1173, %v1411
  %1413 = vmatmul.bf16.gmra.mxu0 %v1150
  %v1414 = vpop.f32.mrf.mxu0
  %v1415 = vadd.f32 %v1173, %v1414
  %v1416 = vpop.f32.mrf.mxu0
  %v1417 = vadd.f32 %v1173, %v1416
  %1418 = vmatmul.bf16.gmra.mxu0 %v1151
  %v1419 = vpop.f32.mrf.mxu0
  %v1420 = vadd.f32 %v1173, %v1419
  %v1421 = vpop.f32.mrf.mxu0
  %v1422 = vadd.f32 %v1173, %v1421
  %1423 = vmatmul.bf16.gmra.mxu0 %v1152
  %v1424 = vpop.f32.mrf.mxu0
  %v1425 = vadd.f32 %v1173, %v1424
  %v1426 = vpop.f32.mrf.mxu0
  %v1427 = vadd.f32 %v1173, %v1426
  %1428 = vmatmul.bf16.gmra.mxu0 %v1153
  %v1429 = vpop.f32.mrf.mxu0
  %v1430 = vadd.f32 %v1173, %v1429
  %v1431 = vpop.f32.mrf.mxu0
  %v1432 = vadd.f32 %v1173, %v1431
  %1433 = vdwg.mxu0
  %vm1434 = vcmp.gt.f32.partialorder %v1266, 0.0
  %vm1435 = vcmp.gt.f32.partialorder %v1355, 0.0
  %vm1436 = vcmp.gt.f32.partialorder %v1268, 0.0
  %vm1437 = vcmp.gt.f32.partialorder %v1357, 0.0
  %vm1438 = vcmp.gt.f32.partialorder %v1271, 0.0
  %vm1439 = vcmp.gt.f32.partialorder %v1360, 0.0
  %vm1440 = vcmp.gt.f32.partialorder %v1273, 0.0
  %vm1441 = vcmp.gt.f32.partialorder %v1362, 0.0
  %vm1442 = vcmp.gt.f32.partialorder %v1276, 0.0
  %vm1443 = vcmp.gt.f32.partialorder %v1365, 0.0
  %vm1444 = vcmp.gt.f32.partialorder %v1278, 0.0
  %vm1445 = vcmp.gt.f32.partialorder %v1367, 0.0
  %vm1446 = vcmp.gt.f32.partialorder %v1281, 0.0
  %vm1447 = vcmp.gt.f32.partialorder %v1370, 0.0
  %vm1448 = vcmp.gt.f32.partialorder %v1283, 0.0
  %vm1449 = vcmp.gt.f32.partialorder %v1372, 0.0
  %vm1450 = vcmp.gt.f32.partialorder %v1286, 0.0
  %vm1451 = vcmp.gt.f32.partialorder %v1375, 0.0
  %vm1452 = vcmp.gt.f32.partialorder %v1288, 0.0
  %vm1453 = vcmp.gt.f32.partialorder %v1377, 0.0
  %vm1454 = vcmp.gt.f32.partialorder %v1291, 0.0
  %vm1455 = vcmp.gt.f32.partialorder %v1380, 0.0
  %vm1456 = vcmp.gt.f32.partialorder %v1293, 0.0
  %vm1457 = vcmp.gt.f32.partialorder %v1382, 0.0
  %vm1458 = vcmp.gt.f32.partialorder %v1296, 0.0
  %vm1459 = vcmp.gt.f32.partialorder %v1385, 0.0
  %vm1460 = vcmp.gt.f32.partialorder %v1298, 0.0
  %vm1461 = vcmp.gt.f32.partialorder %v1387, 0.0
  %vm1462 = vcmp.gt.f32.partialorder %v1301, 0.0
  %vm1463 = vcmp.gt.f32.partialorder %v1390, 0.0
  %vm1464 = vcmp.gt.f32.partialorder %v1303, 0.0
  %vm1465 = vcmp.gt.f32.partialorder %v1392, 0.0
  %vm1466 = vcmp.gt.f32.partialorder %v1306, 0.0
  %vm1467 = vcmp.gt.f32.partialorder %v1395, 0.0
  %vm1468 = vcmp.gt.f32.partialorder %v1308, 0.0
  %vm1469 = vcmp.gt.f32.partialorder %v1397, 0.0
  %vm1470 = vcmp.gt.f32.partialorder %v1311, 0.0
  %vm1471 = vcmp.gt.f32.partialorder %v1400, 0.0
  %vm1472 = vcmp.gt.f32.partialorder %v1313, 0.0
  %vm1473 = vcmp.gt.f32.partialorder %v1402, 0.0
  %vm1474 = vcmp.gt.f32.partialorder %v1316, 0.0
  %vm1475 = vcmp.gt.f32.partialorder %v1405, 0.0
  %vm1476 = vcmp.gt.f32.partialorder %v1318, 0.0
  %vm1477 = vcmp.gt.f32.partialorder %v1407, 0.0
  %vm1478 = vcmp.gt.f32.partialorder %v1321, 0.0
  %vm1479 = vcmp.gt.f32.partialorder %v1410, 0.0
  %vm1480 = vcmp.gt.f32.partialorder %v1323, 0.0
  %vm1481 = vcmp.gt.f32.partialorder %v1412, 0.0
  %vm1482 = vcmp.gt.f32.partialorder %v1326, 0.0
  %vm1483 = vcmp.gt.f32.partialorder %v1415, 0.0
  %vm1484 = vcmp.gt.f32.partialorder %v1328, 0.0
  %vm1485 = vcmp.gt.f32.partialorder %v1417, 0.0
  %vm1486 = vcmp.gt.f32.partialorder %v1331, 0.0
  %vm1487 = vcmp.gt.f32.partialorder %v1420, 0.0
  %vm1488 = vcmp.gt.f32.partialorder %v1333, 0.0
  %vm1489 = vcmp.gt.f32.partialorder %v1422, 0.0
  %vm1490 = vcmp.gt.f32.partialorder %v1336, 0.0
  %vm1491 = vcmp.gt.f32.partialorder %v1425, 0.0
  %vm1492 = vcmp.gt.f32.partialorder %v1338, 0.0
  %vm1493 = vcmp.gt.f32.partialorder %v1427, 0.0
  %vm1494 = vcmp.gt.f32.partialorder %v1341, 0.0
  %vm1495 = vcmp.gt.f32.partialorder %v1430, 0.0
  %vm1496 = vcmp.gt.f32.partialorder %v1343, 0.0
  %vm1497 = vcmp.gt.f32.partialorder %v1432, 0.0
  %v1498 = vmul.f32 %v1266, 1.442695
  %v1499 = vpow.pop %v1498
  %v1500 = vmul.f32 %v1355, 1.442695
  %v1501 = vpow.pop %v1500
  %v1502 = vmul.f32 %v1268, 1.442695
  %v1503 = vpow.pop %v1502
  %v1504 = vmul.f32 %v1357, 1.442695
  %v1505 = vpow.pop %v1504
  %v1506 = vmul.f32 %v1271, 1.442695
  %v1507 = vpow.pop %v1506
  %v1508 = vmul.f32 %v1360, 1.442695
  %v1509 = vpow.pop %v1508
  %v1510 = vmul.f32 %v1273, 1.442695
  %v1511 = vpow.pop %v1510
  %v1512 = vmul.f32 %v1362, 1.442695
  %v1513 = vpow.pop %v1512
  %v1514 = vmul.f32 %v1276, 1.442695
  %v1515 = vpow.pop %v1514
  %v1516 = vmul.f32 %v1365, 1.442695
  %v1517 = vpow.pop %v1516
  %v1518 = vmul.f32 %v1278, 1.442695
  %v1519 = vpow.pop %v1518
  %v1520 = vmul.f32 %v1367, 1.442695
  %v1521 = vpow.pop %v1520
  %v1522 = vmul.f32 %v1281, 1.442695
  %v1523 = vpow.pop %v1522
  %v1524 = vmul.f32 %v1370, 1.442695
  %v1525 = vpow.pop %v1524
  %v1526 = vmul.f32 %v1283, 1.442695
  %v1527 = vpow.pop %v1526
  %v1528 = vmul.f32 %v1372, 1.442695
  %v1529 = vpow.pop %v1528
  %v1530 = vmul.f32 %v1286, 1.442695
  %v1531 = vpow.pop %v1530
  %v1532 = vmul.f32 %v1375, 1.442695
  %v1533 = vpow.pop %v1532
  %v1534 = vmul.f32 %v1288, 1.442695
  %v1535 = vpow.pop %v1534
  %v1536 = vmul.f32 %v1377, 1.442695
  %v1537 = vpow.pop %v1536
  %v1538 = vmul.f32 %v1291, 1.442695
  %v1539 = vpow.pop %v1538
  %v1540 = vmul.f32 %v1380, 1.442695
  %v1541 = vpow.pop %v1540
  %v1542 = vmul.f32 %v1293, 1.442695
  %v1543 = vpow.pop %v1542
  %v1544 = vmul.f32 %v1382, 1.442695
  %v1545 = vpow.pop %v1544
  %v1546 = vmul.f32 %v1296, 1.442695
  %v1547 = vpow.pop %v1546
  %v1548 = vmul.f32 %v1385, 1.442695
  %v1549 = vpow.pop %v1548
  %v1550 = vmul.f32 %v1298, 1.442695
  %v1551 = vpow.pop %v1550
  %v1552 = vmul.f32 %v1387, 1.442695
  %v1553 = vpow.pop %v1552
  %v1554 = vmul.f32 %v1301, 1.442695
  %v1555 = vpow.pop %v1554
  %v1556 = vmul.f32 %v1390, 1.442695
  %v1557 = vpow.pop %v1556
  %v1558 = vmul.f32 %v1303, 1.442695
  %v1559 = vpow.pop %v1558
  %v1560 = vmul.f32 %v1392, 1.442695
  %v1561 = vpow.pop %v1560
  %v1562 = vmul.f32 %v1306, 1.442695
  %v1563 = vpow.pop %v1562
  %v1564 = vmul.f32 %v1395, 1.442695
  %v1565 = vpow.pop %v1564
  %v1566 = vmul.f32 %v1308, 1.442695
  %v1567 = vpow.pop %v1566
  %v1568 = vmul.f32 %v1397, 1.442695
  %v1569 = vpow.pop %v1568
  %v1570 = vmul.f32 %v1311, 1.442695
  %v1571 = vpow.pop %v1570
  %v1572 = vmul.f32 %v1400, 1.442695
  %v1573 = vpow.pop %v1572
  %v1574 = vmul.f32 %v1313, 1.442695
  %v1575 = vpow.pop %v1574
  %v1576 = vmul.f32 %v1402, 1.442695
  %v1577 = vpow.pop %v1576
  %v1578 = vmul.f32 %v1316, 1.442695
  %v1579 = vpow.pop %v1578
  %v1580 = vmul.f32 %v1405, 1.442695
  %v1581 = vpow.pop %v1580
  %v1582 = vmul.f32 %v1318, 1.442695
  %v1583 = vpow.pop %v1582
  %v1584 = vmul.f32 %v1407, 1.442695
  %v1585 = vpow.pop %v1584
  %v1586 = vmul.f32 %v1321, 1.442695
  %v1587 = vpow.pop %v1586
  %v1588 = vmul.f32 %v1410, 1.442695
  %v1589 = vpow.pop %v1588
  %v1590 = vmul.f32 %v1323, 1.442695
  %v1591 = vpow.pop %v1590
  %v1592 = vmul.f32 %v1412, 1.442695
  %v1593 = vpow.pop %v1592
  %v1594 = vmul.f32 %v1326, 1.442695
  %v1595 = vpow.pop %v1594
  %v1596 = vmul.f32 %v1415, 1.442695
  %v1597 = vpow.pop %v1596
  %v1598 = vmul.f32 %v1328, 1.442695
  %v1599 = vpow.pop %v1598
  %v1600 = vmul.f32 %v1417, 1.442695
  %v1601 = vpow.pop %v1600
  %v1602 = vmul.f32 %v1331, 1.442695
  %v1603 = vpow.pop %v1602
  %v1604 = vmul.f32 %v1420, 1.442695
  %v1605 = vpow.pop %v1604
  %v1606 = vmul.f32 %v1333, 1.442695
  %v1607 = vpow.pop %v1606
  %v1608 = vmul.f32 %v1422, 1.442695
  %v1609 = vpow.pop %v1608
  %v1610 = vmul.f32 %v1336, 1.442695
  %v1611 = vpow.pop %v1610
  %v1612 = vmul.f32 %v1425, 1.442695
  %v1613 = vpow.pop %v1612
  %v1614 = vmul.f32 %v1338, 1.442695
  %v1615 = vpow.pop %v1614
  %v1616 = vmul.f32 %v1427, 1.442695
  %v1617 = vpow.pop %v1616
  %v1618 = vmul.f32 %v1341, 1.442695
  %v1619 = vpow.pop %v1618
  %v1620 = vmul.f32 %v1430, 1.442695
  %v1621 = vpow.pop %v1620
  %v1622 = vmul.f32 %v1343, 1.442695
  %v1623 = vpow.pop %v1622
  %v1624 = vmul.f32 %v1432, 1.442695
  %v1625 = vpow.pop %v1624
  %v1626 = vsub.f32 %v1499, 1.0
  %v1627 = vsub.f32 %v1501, 1.0
  %v1628 = vsub.f32 %v1503, 1.0
  %v1629 = vsub.f32 %v1505, 1.0
  %v1630 = vsub.f32 %v1507, 1.0
  %v1631 = vsub.f32 %v1509, 1.0
  %v1632 = vsub.f32 %v1511, 1.0
  %v1633 = vsub.f32 %v1513, 1.0
  %v1634 = vsub.f32 %v1515, 1.0
  %v1635 = vsub.f32 %v1517, 1.0
  %v1636 = vsub.f32 %v1519, 1.0
  %v1637 = vsub.f32 %v1521, 1.0
  %v1638 = vsub.f32 %v1523, 1.0
  %v1639 = vsub.f32 %v1525, 1.0
  %v1640 = vsub.f32 %v1527, 1.0
  %v1641 = vsub.f32 %v1529, 1.0
  %v1642 = vsub.f32 %v1531, 1.0
  %v1643 = vsub.f32 %v1533, 1.0
  %v1644 = vsub.f32 %v1535, 1.0
  %v1645 = vsub.f32 %v1537, 1.0
  %v1646 = vsub.f32 %v1539, 1.0
  %v1647 = vsub.f32 %v1541, 1.0
  %v1648 = vsub.f32 %v1543, 1.0
  %v1649 = vsub.f32 %v1545, 1.0
  %v1650 = vsub.f32 %v1547, 1.0
  %v1651 = vsub.f32 %v1549, 1.0
  %v1652 = vsub.f32 %v1551, 1.0
  %v1653 = vsub.f32 %v1553, 1.0
  %v1654 = vsub.f32 %v1555, 1.0
  %v1655 = vsub.f32 %v1557, 1.0
  %v1656 = vsub.f32 %v1559, 1.0
  %v1657 = vsub.f32 %v1561, 1.0
  %v1658 = vsub.f32 %v1563, 1.0
  %v1659 = vsub.f32 %v1565, 1.0
  %v1660 = vsub.f32 %v1567, 1.0
  %v1661 = vsub.f32 %v1569, 1.0
  %v1662 = vsub.f32 %v1571, 1.0
  %v1663 = vsub.f32 %v1573, 1.0
  %v1664 = vsub.f32 %v1575, 1.0
  %v1665 = vsub.f32 %v1577, 1.0
  %v1666 = vsub.f32 %v1579, 1.0
  %v1667 = vsub.f32 %v1581, 1.0
  %v1668 = vsub.f32 %v1583, 1.0
  %v1669 = vsub.f32 %v1585, 1.0
  %v1670 = vsub.f32 %v1587, 1.0
  %v1671 = vsub.f32 %v1589, 1.0
  %v1672 = vsub.f32 %v1591, 1.0
  %v1673 = vsub.f32 %v1593, 1.0
  %v1674 = vsub.f32 %v1595, 1.0
  %v1675 = vsub.f32 %v1597, 1.0
  %v1676 = vsub.f32 %v1599, 1.0
  %v1677 = vsub.f32 %v1601, 1.0
  %v1678 = vsub.f32 %v1603, 1.0
  %v1679 = vsub.f32 %v1605, 1.0
  %v1680 = vsub.f32 %v1607, 1.0
  %v1681 = vsub.f32 %v1609, 1.0
  %v1682 = vsub.f32 %v1611, 1.0
  %v1683 = vsub.f32 %v1613, 1.0
  %v1684 = vsub.f32 %v1615, 1.0
  %v1685 = vsub.f32 %v1617, 1.0
  %v1686 = vsub.f32 %v1619, 1.0
  %v1687 = vsub.f32 %v1621, 1.0
  %v1688 = vsub.f32 %v1623, 1.0
  %v1689 = vsub.f32 %v1625, 1.0
  %v1690 = vmul.f32 %v1626, 1.6732632
  %v1691 = vmul.f32 %v1627, 1.6732632
  %v1692 = vmul.f32 %v1628, 1.6732632
  %v1693 = vmul.f32 %v1629, 1.6732632
  %v1694 = vmul.f32 %v1630, 1.6732632
  %v1695 = vmul.f32 %v1631, 1.6732632
  %v1696 = vmul.f32 %v1632, 1.6732632
  %v1697 = vmul.f32 %v1633, 1.6732632
  %v1698 = vmul.f32 %v1634, 1.6732632
  %v1699 = vmul.f32 %v1635, 1.6732632
  %v1700 = vmul.f32 %v1636, 1.6732632
  %v1701 = vmul.f32 %v1637, 1.6732632
  %v1702 = vmul.f32 %v1638, 1.6732632
  %v1703 = vmul.f32 %v1639, 1.6732632
  %v1704 = vmul.f32 %v1640, 1.6732632
  %v1705 = vmul.f32 %v1641, 1.6732632
  %v1706 = vmul.f32 %v1642, 1.6732632
  %v1707 = vmul.f32 %v1643, 1.6732632
  %v1708 = vmul.f32 %v1644, 1.6732632
  %v1709 = vmul.f32 %v1645, 1.6732632
  %v1710 = vmul.f32 %v1646, 1.6732632
  %v1711 = vmul.f32 %v1647, 1.6732632
  %v1712 = vmul.f32 %v1648, 1.6732632
  %v1713 = vmul.f32 %v1649, 1.6732632
  %v1714 = vmul.f32 %v1650, 1.6732632
  %v1715 = vmul.f32 %v1651, 1.6732632
  %v1716 = vmul.f32 %v1652, 1.6732632
  %v1717 = vmul.f32 %v1653, 1.6732632
  %v1718 = vmul.f32 %v1654, 1.6732632
  %v1719 = vmul.f32 %v1655, 1.6732632
  %v1720 = vmul.f32 %v1656, 1.6732632
  %v1721 = vmul.f32 %v1657, 1.6732632
  %v1722 = vmul.f32 %v1658, 1.6732632
  %v1723 = vmul.f32 %v1659, 1.6732632
  %v1724 = vmul.f32 %v1660, 1.6732632
  %v1725 = vmul.f32 %v1661, 1.6732632
  %v1726 = vmul.f32 %v1662, 1.6732632
  %v1727 = vmul.f32 %v1663, 1.6732632
  %v1728 = vmul.f32 %v1664, 1.6732632
  %v1729 = vmul.f32 %v1665, 1.6732632
  %v1730 = vmul.f32 %v1666, 1.6732632
  %v1731 = vmul.f32 %v1667, 1.6732632
  %v1732 = vmul.f32 %v1668, 1.6732632
  %v1733 = vmul.f32 %v1669, 1.6732632
  %v1734 = vmul.f32 %v1670, 1.6732632
  %v1735 = vmul.f32 %v1671, 1.6732632
  %v1736 = vmul.f32 %v1672, 1.6732632
  %v1737 = vmul.f32 %v1673, 1.6732632
  %v1738 = vmul.f32 %v1674, 1.6732632
  %v1739 = vmul.f32 %v1675, 1.6732632
  %v1740 = vmul.f32 %v1676, 1.6732632
  %v1741 = vmul.f32 %v1677, 1.6732632
  %v1742 = vmul.f32 %v1678, 1.6732632
  %v1743 = vmul.f32 %v1679, 1.6732632
  %v1744 = vmul.f32 %v1680, 1.6732632
  %v1745 = vmul.f32 %v1681, 1.6732632
  %v1746 = vmul.f32 %v1682, 1.6732632
  %v1747 = vmul.f32 %v1683, 1.6732632
  %v1748 = vmul.f32 %v1684, 1.6732632
  %v1749 = vmul.f32 %v1685, 1.6732632
  %v1750 = vmul.f32 %v1686, 1.6732632
  %v1751 = vmul.f32 %v1687, 1.6732632
  %v1752 = vmul.f32 %v1688, 1.6732632
  %v1753 = vmul.f32 %v1689, 1.6732632
  %v1754 = vsel %vm1434, %v1266, %v1690
  %v1755 = vsel %vm1435, %v1355, %v1691
  %v1756 = vsel %vm1436, %v1268, %v1692
  %v1757 = vsel %vm1437, %v1357, %v1693
  %v1758 = vsel %vm1438, %v1271, %v1694
  %v1759 = vsel %vm1439, %v1360, %v1695
  %v1760 = vsel %vm1440, %v1273, %v1696
  %v1761 = vsel %vm1441, %v1362, %v1697
  %v1762 = vsel %vm1442, %v1276, %v1698
  %v1763 = vsel %vm1443, %v1365, %v1699
  %v1764 = vsel %vm1444, %v1278, %v1700
  %v1765 = vsel %vm1445, %v1367, %v1701
  %v1766 = vsel %vm1446, %v1281, %v1702
  %v1767 = vsel %vm1447, %v1370, %v1703
  %v1768 = vsel %vm1448, %v1283, %v1704
  %v1769 = vsel %vm1449, %v1372, %v1705
  %v1770 = vsel %vm1450, %v1286, %v1706
  %v1771 = vsel %vm1451, %v1375, %v1707
  %v1772 = vsel %vm1452, %v1288, %v1708
  %v1773 = vsel %vm1453, %v1377, %v1709
  %v1774 = vsel %vm1454, %v1291, %v1710
  %v1775 = vsel %vm1455, %v1380, %v1711
  %v1776 = vsel %vm1456, %v1293, %v1712
  %v1777 = vsel %vm1457, %v1382, %v1713
  %v1778 = vsel %vm1458, %v1296, %v1714
  %v1779 = vsel %vm1459, %v1385, %v1715
  %v1780 = vsel %vm1460, %v1298, %v1716
  %v1781 = vsel %vm1461, %v1387, %v1717
  %v1782 = vsel %vm1462, %v1301, %v1718
  %v1783 = vsel %vm1463, %v1390, %v1719
  %v1784 = vsel %vm1464, %v1303, %v1720
  %v1785 = vsel %vm1465, %v1392, %v1721
  %v1786 = vsel %vm1466, %v1306, %v1722
  %v1787 = vsel %vm1467, %v1395, %v1723
  %v1788 = vsel %vm1468, %v1308, %v1724
  %v1789 = vsel %vm1469, %v1397, %v1725
  %v1790 = vsel %vm1470, %v1311, %v1726
  %v1791 = vsel %vm1471, %v1400, %v1727
  %v1792 = vsel %vm1472, %v1313, %v1728
  %v1793 = vsel %vm1473, %v1402, %v1729
  %v1794 = vsel %vm1474, %v1316, %v1730
  %v1795 = vsel %vm1475, %v1405, %v1731
  %v1796 = vsel %vm1476, %v1318, %v1732
  %v1797 = vsel %vm1477, %v1407, %v1733
  %v1798 = vsel %vm1478, %v1321, %v1734
  %v1799 = vsel %vm1479, %v1410, %v1735
  %v1800 = vsel %vm1480, %v1323, %v1736
  %v1801 = vsel %vm1481, %v1412, %v1737
  %v1802 = vsel %vm1482, %v1326, %v1738
  %v1803 = vsel %vm1483, %v1415, %v1739
  %v1804 = vsel %vm1484, %v1328, %v1740
  %v1805 = vsel %vm1485, %v1417, %v1741
  %v1806 = vsel %vm1486, %v1331, %v1742
  %v1807 = vsel %vm1487, %v1420, %v1743
  %v1808 = vsel %vm1488, %v1333, %v1744
  %v1809 = vsel %vm1489, %v1422, %v1745
  %v1810 = vsel %vm1490, %v1336, %v1746
  %v1811 = vsel %vm1491, %v1425, %v1747
  %v1812 = vsel %vm1492, %v1338, %v1748
  %v1813 = vsel %vm1493, %v1427, %v1749
  %v1814 = vsel %vm1494, %v1341, %v1750
  %v1815 = vsel %vm1495, %v1430, %v1751
  %v1816 = vsel %vm1496, %v1343, %v1752
  %v1817 = vsel %vm1497, %v1432, %v1753
  %v1818 = vmul.f32 %v1754, 1.050701
  %v1819 = vmul.f32 %v1755, 1.050701
  %v1820 = vmul.f32 %v1756, 1.050701
  %v1821 = vmul.f32 %v1757, 1.050701
  %v1822 = vmul.f32 %v1758, 1.050701
  %v1823 = vmul.f32 %v1759, 1.050701
  %v1824 = vmul.f32 %v1760, 1.050701
  %v1825 = vmul.f32 %v1761, 1.050701
  %v1826 = vmul.f32 %v1762, 1.050701
  %v1827 = vmul.f32 %v1763, 1.050701
  %v1828 = vmul.f32 %v1764, 1.050701
  %v1829 = vmul.f32 %v1765, 1.050701
  %v1830 = vmul.f32 %v1766, 1.050701
  %v1831 = vmul.f32 %v1767, 1.050701
  %v1832 = vmul.f32 %v1768, 1.050701
  %v1833 = vmul.f32 %v1769, 1.050701
  %v1834 = vmul.f32 %v1770, 1.050701
  %v1835 = vmul.f32 %v1771, 1.050701
  %v1836 = vmul.f32 %v1772, 1.050701
  %v1837 = vmul.f32 %v1773, 1.050701
  %v1838 = vmul.f32 %v1774, 1.050701
  %v1839 = vmul.f32 %v1775, 1.050701
  %v1840 = vmul.f32 %v1776, 1.050701
  %v1841 = vmul.f32 %v1777, 1.050701
  %v1842 = vmul.f32 %v1778, 1.050701
  %v1843 = vmul.f32 %v1779, 1.050701
  %v1844 = vmul.f32 %v1780, 1.050701
  %v1845 = vmul.f32 %v1781, 1.050701
  %v1846 = vmul.f32 %v1782, 1.050701
  %v1847 = vmul.f32 %v1783, 1.050701
  %v1848 = vmul.f32 %v1784, 1.050701
  %v1849 = vmul.f32 %v1785, 1.050701
  %v1850 = vmul.f32 %v1786, 1.050701
  %v1851 = vmul.f32 %v1787, 1.050701
  %v1852 = vmul.f32 %v1788, 1.050701
  %v1853 = vmul.f32 %v1789, 1.050701
  %v1854 = vmul.f32 %v1790, 1.050701
  %v1855 = vmul.f32 %v1791, 1.050701
  %v1856 = vmul.f32 %v1792, 1.050701
  %v1857 = vmul.f32 %v1793, 1.050701
  %v1858 = vmul.f32 %v1794, 1.050701
  %v1859 = vmul.f32 %v1795, 1.050701
  %v1860 = vmul.f32 %v1796, 1.050701
  %v1861 = vmul.f32 %v1797, 1.050701
  %v1862 = vmul.f32 %v1798, 1.050701
  %v1863 = vmul.f32 %v1799, 1.050701
  %v1864 = vmul.f32 %v1800, 1.050701
  %v1865 = vmul.f32 %v1801, 1.050701
  %v1866 = vmul.f32 %v1802, 1.050701
  %v1867 = vmul.f32 %v1803, 1.050701
  %v1868 = vmul.f32 %v1804, 1.050701
  %v1869 = vmul.f32 %v1805, 1.050701
  %v1870 = vmul.f32 %v1806, 1.050701
  %v1871 = vmul.f32 %v1807, 1.050701
  %v1872 = vmul.f32 %v1808, 1.050701
  %v1873 = vmul.f32 %v1809, 1.050701
  %v1874 = vmul.f32 %v1810, 1.050701
  %v1875 = vmul.f32 %v1811, 1.050701
  %v1876 = vmul.f32 %v1812, 1.050701
  %v1877 = vmul.f32 %v1813, 1.050701
  %v1878 = vmul.f32 %v1814, 1.050701
  %v1879 = vmul.f32 %v1815, 1.050701
  %v1880 = vmul.f32 %v1816, 1.050701
  %v1881 = vmul.f32 %v1817, 1.050701
  %v1882 = vld [vmem:[%s5] sm:$0x3]
  %v1884 = vperm.slane %v1882, 0
  %v1885 = vperm.slane %v1882, 1
  %v1888 = vmul.f32 %v1818, %v1884
  %v1889 = vmul.f32 %v1819, %v1885
  %v1890 = vmul.f32 %v1820, %v1884
  %v1891 = vmul.f32 %v1821, %v1885
  %v1892 = vmul.f32 %v1822, %v1884
  %v1893 = vmul.f32 %v1823, %v1885
  %v1894 = vmul.f32 %v1824, %v1884
  %v1895 = vmul.f32 %v1825, %v1885
  %v1896 = vmul.f32 %v1826, %v1884
  %v1897 = vmul.f32 %v1827, %v1885
  %v1898 = vmul.f32 %v1828, %v1884
  %v1899 = vmul.f32 %v1829, %v1885
  %v1900 = vmul.f32 %v1830, %v1884
  %v1901 = vmul.f32 %v1831, %v1885
  %v1902 = vmul.f32 %v1832, %v1884
  %v1903 = vmul.f32 %v1833, %v1885
  %v1904 = vmul.f32 %v1834, %v1884
  %v1905 = vmul.f32 %v1835, %v1885
  %v1906 = vmul.f32 %v1836, %v1884
  %v1907 = vmul.f32 %v1837, %v1885
  %v1908 = vmul.f32 %v1838, %v1884
  %v1909 = vmul.f32 %v1839, %v1885
  %v1910 = vmul.f32 %v1840, %v1884
  %v1911 = vmul.f32 %v1841, %v1885
  %v1912 = vmul.f32 %v1842, %v1884
  %v1913 = vmul.f32 %v1843, %v1885
  %v1914 = vmul.f32 %v1844, %v1884
  %v1915 = vmul.f32 %v1845, %v1885
  %v1916 = vmul.f32 %v1846, %v1884
  %v1917 = vmul.f32 %v1847, %v1885
  %v1918 = vmul.f32 %v1848, %v1884
  %v1919 = vmul.f32 %v1849, %v1885
  %v1920 = vmul.f32 %v1850, %v1884
  %v1921 = vmul.f32 %v1851, %v1885
  %v1922 = vmul.f32 %v1852, %v1884
  %v1923 = vmul.f32 %v1853, %v1885
  %v1924 = vmul.f32 %v1854, %v1884
  %v1925 = vmul.f32 %v1855, %v1885
  %v1926 = vmul.f32 %v1856, %v1884
  %v1927 = vmul.f32 %v1857, %v1885
  %v1928 = vmul.f32 %v1858, %v1884
  %v1929 = vmul.f32 %v1859, %v1885
  %v1930 = vmul.f32 %v1860, %v1884
  %v1931 = vmul.f32 %v1861, %v1885
  %v1932 = vmul.f32 %v1862, %v1884
  %v1933 = vmul.f32 %v1863, %v1885
  %v1934 = vmul.f32 %v1864, %v1884
  %v1935 = vmul.f32 %v1865, %v1885
  %v1936 = vmul.f32 %v1866, %v1884
  %v1937 = vmul.f32 %v1867, %v1885
  %v1938 = vmul.f32 %v1868, %v1884
  %v1939 = vmul.f32 %v1869, %v1885
  %v1940 = vmul.f32 %v1870, %v1884
  %v1941 = vmul.f32 %v1871, %v1885
  %v1942 = vmul.f32 %v1872, %v1884
  %v1943 = vmul.f32 %v1873, %v1885
  %v1944 = vmul.f32 %v1874, %v1884
  %v1945 = vmul.f32 %v1875, %v1885
  %v1946 = vmul.f32 %v1876, %v1884
  %v1947 = vmul.f32 %v1877, %v1885
  %v1948 = vmul.f32 %v1878, %v1884
  %v1949 = vmul.f32 %v1879, %v1885
  %v1950 = vmul.f32 %v1880, %v1884
  %v1951 = vmul.f32 %v1881, %v1885
  %v1952 = vadd.f32 %v1888, %v1889
  %1953 = vadd.xlane.f32.xlu0 %v1952
  %v1954 = vpop.xlane.xlu0 %1953
  %v1955 = vadd.f32 %v1890, %v1891
  %1956 = vadd.xlane.f32.xlu0 %v1955
  %v1957 = vpop.xlane.xlu0 %1956
  %v1958 = vadd.f32 %v1892, %v1893
  %1959 = vadd.xlane.f32.xlu0 %v1958
  %v1960 = vpop.xlane.xlu0 %1959
  %v1961 = vadd.f32 %v1894, %v1895
  %1962 = vadd.xlane.f32.xlu0 %v1961
  %v1963 = vpop.xlane.xlu0 %1962
  %v1964 = vadd.f32 %v1896, %v1897
  %1965 = vadd.xlane.f32.xlu0 %v1964
  %v1966 = vpop.xlane.xlu0 %1965
  %v1967 = vadd.f32 %v1898, %v1899
  %1968 = vadd.xlane.f32.xlu0 %v1967
  %v1969 = vpop.xlane.xlu0 %1968
  %v1970 = vadd.f32 %v1900, %v1901
  %1971 = vadd.xlane.f32.xlu0 %v1970
  %v1972 = vpop.xlane.xlu0 %1971
  %v1973 = vadd.f32 %v1902, %v1903
  %1974 = vadd.xlane.f32.xlu0 %v1973
  %v1975 = vpop.xlane.xlu0 %1974
  %v1976 = vadd.f32 %v1904, %v1905
  %1977 = vadd.xlane.f32.xlu0 %v1976
  %v1978 = vpop.xlane.xlu0 %1977
  %v1979 = vadd.f32 %v1906, %v1907
  %1980 = vadd.xlane.f32.xlu0 %v1979
  %v1981 = vpop.xlane.xlu0 %1980
  %v1982 = vadd.f32 %v1908, %v1909
  %1983 = vadd.xlane.f32.xlu0 %v1982
  %v1984 = vpop.xlane.xlu0 %1983
  %v1985 = vadd.f32 %v1910, %v1911
  %1986 = vadd.xlane.f32.xlu0 %v1985
  %v1987 = vpop.xlane.xlu0 %1986
  %v1988 = vadd.f32 %v1912, %v1913
  %1989 = vadd.xlane.f32.xlu0 %v1988
  %v1990 = vpop.xlane.xlu0 %1989
  %v1991 = vadd.f32 %v1914, %v1915
  %1992 = vadd.xlane.f32.xlu0 %v1991
  %v1993 = vpop.xlane.xlu0 %1992
  %v1994 = vadd.f32 %v1916, %v1917
  %1995 = vadd.xlane.f32.xlu0 %v1994
  %v1996 = vpop.xlane.xlu0 %1995
  %v1997 = vadd.f32 %v1918, %v1919
  %1998 = vadd.xlane.f32.xlu0 %v1997
  %v1999 = vpop.xlane.xlu0 %1998
  %v2000 = vadd.f32 %v1920, %v1921
  %2001 = vadd.xlane.f32.xlu0 %v2000
  %v2002 = vpop.xlane.xlu0 %2001
  %v2003 = vadd.f32 %v1922, %v1923
  %2004 = vadd.xlane.f32.xlu0 %v2003
  %v2005 = vpop.xlane.xlu0 %2004
  %v2006 = vadd.f32 %v1924, %v1925
  %2007 = vadd.xlane.f32.xlu0 %v2006
  %v2008 = vpop.xlane.xlu0 %2007
  %v2009 = vadd.f32 %v1926, %v1927
  %2010 = vadd.xlane.f32.xlu0 %v2009
  %v2011 = vpop.xlane.xlu0 %2010
  %v2012 = vadd.f32 %v1928, %v1929
  %2013 = vadd.xlane.f32.xlu0 %v2012
  %v2014 = vpop.xlane.xlu0 %2013
  %v2015 = vadd.f32 %v1930, %v1931
  %2016 = vadd.xlane.f32.xlu0 %v2015
  %v2017 = vpop.xlane.xlu0 %2016
  %v2018 = vadd.f32 %v1932, %v1933
  %2019 = vadd.xlane.f32.xlu0 %v2018
  %v2020 = vpop.xlane.xlu0 %2019
  %v2021 = vadd.f32 %v1934, %v1935
  %2022 = vadd.xlane.f32.xlu0 %v2021
  %v2023 = vpop.xlane.xlu0 %2022
  %v2024 = vadd.f32 %v1936, %v1937
  %2025 = vadd.xlane.f32.xlu0 %v2024
  %v2026 = vpop.xlane.xlu0 %2025
  %v2027 = vadd.f32 %v1938, %v1939
  %2028 = vadd.xlane.f32.xlu0 %v2027
  %v2029 = vpop.xlane.xlu0 %2028
  %v2030 = vadd.f32 %v1940, %v1941
  %2031 = vadd.xlane.f32.xlu0 %v2030
  %v2032 = vpop.xlane.xlu0 %2031
  %v2033 = vadd.f32 %v1942, %v1943
  %2034 = vadd.xlane.f32.xlu0 %v2033
  %v2035 = vpop.xlane.xlu0 %2034
  %v2036 = vadd.f32 %v1944, %v1945
  %2037 = vadd.xlane.f32.xlu0 %v2036
  %v2038 = vpop.xlane.xlu0 %2037
  %v2039 = vadd.f32 %v1946, %v1947
  %2040 = vadd.xlane.f32.xlu0 %v2039
  %v2041 = vpop.xlane.xlu0 %2040
  %v2042 = vadd.f32 %v1948, %v1949
  %2043 = vadd.xlane.f32.xlu0 %v2042
  %v2044 = vpop.xlane.xlu0 %2043
  %v2045 = vadd.f32 %v1950, %v1951
  %2046 = vadd.xlane.f32.xlu0 %v2045
  %v2047 = vpop.xlane.xlu0 %2046
  %v2048 = vld [vmem:[#allocation2] sm:$0x1]
  %v2050 = vperm.slane %v2048, 0
  %v2052 = vadd.f32 %v1954, %v2050
  %v2053 = vadd.f32 %v1957, %v2050
  %v2054 = vadd.f32 %v1960, %v2050
  %v2055 = vadd.f32 %v1963, %v2050
  %v2056 = vadd.f32 %v1966, %v2050
  %v2057 = vadd.f32 %v1969, %v2050
  %v2058 = vadd.f32 %v1972, %v2050
  %v2059 = vadd.f32 %v1975, %v2050
  %v2060 = vadd.f32 %v1978, %v2050
  %v2061 = vadd.f32 %v1981, %v2050
  %v2062 = vadd.f32 %v1984, %v2050
  %v2063 = vadd.f32 %v1987, %v2050
  %v2064 = vadd.f32 %v1990, %v2050
  %v2065 = vadd.f32 %v1993, %v2050
  %v2066 = vadd.f32 %v1996, %v2050
  %v2067 = vadd.f32 %v1999, %v2050
  %v2068 = vadd.f32 %v2002, %v2050
  %v2069 = vadd.f32 %v2005, %v2050
  %v2070 = vadd.f32 %v2008, %v2050
  %v2071 = vadd.f32 %v2011, %v2050
  %v2072 = vadd.f32 %v2014, %v2050
  %v2073 = vadd.f32 %v2017, %v2050
  %v2074 = vadd.f32 %v2020, %v2050
  %v2075 = vadd.f32 %v2023, %v2050
  %v2076 = vadd.f32 %v2026, %v2050
  %v2077 = vadd.f32 %v2029, %v2050
  %v2078 = vadd.f32 %v2032, %v2050
  %v2079 = vadd.f32 %v2035, %v2050
  %v2080 = vadd.f32 %v2038, %v2050
  %v2081 = vadd.f32 %v2041, %v2050
  %v2082 = vadd.f32 %v2044, %v2050
  %v2083 = vadd.f32 %v2047, %v2050
  %vm2084 = vcmask 7168
  %2085 = vst.msk [vmem:[%s7] sm:$0xff] %vm2084, %v2052
  %2086 = vst.msk [vmem:[%s7 + $0x8] sm:$0xff] %vm2084, %v2053
  %2087 = vst.msk [vmem:[%s7 + $0x10] sm:$0xff] %vm2084, %v2054
  %2088 = vst.msk [vmem:[%s7 + $0x18] sm:$0xff] %vm2084, %v2055
  %2089 = vst.msk [vmem:[%s7 + $0x20] sm:$0xff] %vm2084, %v2056
  %2090 = vst.msk [vmem:[%s7 + $0x28] sm:$0xff] %vm2084, %v2057
  %2091 = vst.msk [vmem:[%s7 + $0x30] sm:$0xff] %vm2084, %v2058
  %2092 = vst.msk [vmem:[%s7 + $0x38] sm:$0xff] %vm2084, %v2059
  %2093 = vst.msk [vmem:[%s7 + $0x40] sm:$0xff] %vm2084, %v2060
  %2094 = vst.msk [vmem:[%s7 + $0x48] sm:$0xff] %vm2084, %v2061
  %2095 = vst.msk [vmem:[%s7 + $0x50] sm:$0xff] %vm2084, %v2062
  %2096 = vst.msk [vmem:[%s7 + $0x58] sm:$0xff] %vm2084, %v2063
  %2097 = vst.msk [vmem:[%s7 + $0x60] sm:$0xff] %vm2084, %v2064
  %2098 = vst.msk [vmem:[%s7 + $0x68] sm:$0xff] %vm2084, %v2065
  %2099 = vst.msk [vmem:[%s7 + $0x70] sm:$0xff] %vm2084, %v2066
  %2100 = vst.msk [vmem:[%s7 + $0x78] sm:$0xff] %vm2084, %v2067
  %2101 = vst.msk [vmem:[%s7 + $0x80] sm:$0xff] %vm2084, %v2068
  %2102 = vst.msk [vmem:[%s7 + $0x88] sm:$0xff] %vm2084, %v2069
  %2103 = vst.msk [vmem:[%s7 + $0x90] sm:$0xff] %vm2084, %v2070
  %2104 = vst.msk [vmem:[%s7 + $0x98] sm:$0xff] %vm2084, %v2071
  %2105 = vst.msk [vmem:[%s7 + $0xa0] sm:$0xff] %vm2084, %v2072
  %2106 = vst.msk [vmem:[%s7 + $0xa8] sm:$0xff] %vm2084, %v2073
  %2107 = vst.msk [vmem:[%s7 + $0xb0] sm:$0xff] %vm2084, %v2074
  %2108 = vst.msk [vmem:[%s7 + $0xb8] sm:$0xff] %vm2084, %v2075
  %2109 = vst.msk [vmem:[%s7 + $0xc0] sm:$0xff] %vm2084, %v2076
  %2110 = vst.msk [vmem:[%s7 + $0xc8] sm:$0xff] %vm2084, %v2077
  %2111 = vst.msk [vmem:[%s7 + $0xd0] sm:$0xff] %vm2084, %v2078
  %2112 = vst.msk [vmem:[%s7 + $0xd8] sm:$0xff] %vm2084, %v2079
  %2113 = vst.msk [vmem:[%s7 + $0xe0] sm:$0xff] %vm2084, %v2080
  %2114 = vst.msk [vmem:[%s7 + $0xe8] sm:$0xff] %vm2084, %v2081
  %2115 = vst.msk [vmem:[%s7 + $0xf0] sm:$0xff] %vm2084, %v2082
  %2116 = vst.msk [vmem:[%s7 + $0xf8] sm:$0xff] %vm2084, %v2083
  // Predicated region
  $region30: #{nn_layer_forward.1} parent=0 // pred_check
    _
  $region31: #{nn_layer_forward.1} parent=0 // pred_check_branch
    %2118 = sbr.rel (0) target = $region33
  $region32: #{nn_layer_forward.1} parent=0 // pred_region
    _
  $region33: #{nn_layer_forward.1} parent=0 // pred_fallthru
    _
  // Predicated region
  $region34: #{nn_layer_forward.1} parent=0 // pred_check
    _
  $region35: #{nn_layer_forward.1} parent=0 // pred_check_branch
    %2120 = sbr.rel (0) target = $region37
  $region36: #{nn_layer_forward.1} parent=0 // pred_region
    _
  $region37: #{nn_layer_forward.1} parent=0 // pred_fallthru
    _

</llo_original>
